<compile_context>
chip_gen: v5e
topology: v5e:2x2
jax: 0.10.0
libtpu: 0.0.40
codegen_flags: <defaults>
</compile_context>

<pallas_src>
import functools
import math

import jax
import jax.numpy as jnp
from jax import lax
from jax.experimental import pallas as pl
from jax.experimental.pallas import tpu as pltpu

# ----------------------- small BERT config (synthetic) -----------------------
CFG = dict(
    vocab_size=64,
    hidden=32,
    layers=2,
    heads=4,
    intermediate=64,
    max_pos=16,
    type_vocab=2,
    ln_eps=1e-12,
)


# ------------------------------ in-kernel math --------------------------------

def _layernorm(x, g, b, eps):
    mean = jnp.mean(x, axis=-1, keepdims=True)
    c = x - mean
    var = jnp.mean(c * c, axis=-1, keepdims=True)
    return c * lax.rsqrt(var + eps) * g + b


# -------------------- fused BERT kernel (grid = (batch, layer)) ---------------

def _bert_kernel(tok_ref, mask_ref, word_ref, pos_ref, type_ref, embg_ref, embb_ref,
                 wqkv_ref, bqkv_ref, wo_ref, bo_ref, ln1g_ref, ln1b_ref,
                 wi_ref, bi_ref, wo2_ref, bo2_ref, ln2g_ref, ln2b_ref,
                 wp_ref, bp_ref,
                 seq_ref, pooled_ref,
                 *, S, nH, eps):
    l = pl.program_id(1)
    n_layers = pl.num_programs(1)
    H = wo_ref.shape[0]
    Dh = H // nH

    # ---- layer 0: embeddings + LayerNorm, written into the resident output block ----
    @pl.when(l == 0)
    def _():
        tok = tok_ref[...]                                        # (S, 1) int32
        V = word_ref.shape[0]
        # bf16 one-hot gather (exact 0/1) against the bf16 word table -> full-rate MXU.
        onehot = (lax.broadcasted_iota(jnp.int32, (S, V), 1) == tok).astype(jnp.bfloat16)
        x = jnp.dot(onehot, word_ref[...], preferred_element_type=jnp.float32)
        # position ids are 0..S-1 -> just the first S rows of the table (no gather),
        # token_type_ids default to 0 (HF BertModel default when none are passed).
        x = x + pos_ref[...] + type_ref[0:1, :]
        seq_ref[...] = _layernorm(x, embg_ref[...], embb_ref[...], eps)

    h = seq_ref[...]                                              # (S, H) f32, VMEM-resident

    # ---- fused QKV projection (1/sqrt(Dh) already folded into the Q slice of wqkv) ----
    qkv = jnp.dot(h.astype(jnp.bfloat16), wqkv_ref[...],
                  preferred_element_type=jnp.float32) + bqkv_ref[...]   # (S, 3H)

    # additive attention mask (HF convention), built once per layer from the raw mask
    bias = (1.0 - mask_ref[0]) * jnp.float32(-10000.0)            # (1, S)

    # ---- multi-head attention, heads batched as a leading einsum batch dim ----
    qh = jnp.stack([qkv[:, i * Dh:(i + 1) * Dh] for i in range(nH)], axis=0).astype(jnp.bfloat16)
    kh = jnp.stack([qkv[:, H + i * Dh:H + (i + 1) * Dh] for i in range(nH)], axis=0).astype(jnp.bfloat16)
    vh = jnp.stack([qkv[:, 2 * H + i * Dh:2 * H + (i + 1) * Dh] for i in range(nH)], axis=0).astype(jnp.bfloat16)
    s = jnp.einsum("hqd,hkd->hqk", qh, kh,
                   preferred_element_type=jnp.float32)            # (nH, S, S)
    s = s + bias[None, :, :]
    m = jnp.max(s, axis=-1, keepdims=True)
    p = jnp.exp(s - m)
    p = p * pl.reciprocal(jnp.sum(p, axis=-1, keepdims=True), approx=True)
    ch = jnp.einsum("hqk,hkd->hqd", p.astype(jnp.bfloat16), vh,
                    preferred_element_type=jnp.float32)           # (nH, S, Dh)
    # lane-dense (S, H) context assembled in vregs, fed straight into the output projection
    ctx = jnp.concatenate([ch[i] for i in range(nH)], axis=-1)

    # ---- attention output projection + residual + LayerNorm ----
    attn = jnp.dot(ctx.astype(jnp.bfloat16), wo_ref[...],
                   preferred_element_type=jnp.float32) + bo_ref[...]
    x1 = _layernorm(attn + h, ln1g_ref[...], ln1b_ref[...], eps)

    # ---- FFN: exact erf-GELU intermediate + output + residual + LayerNorm ----
    inter = jnp.dot(x1.astype(jnp.bfloat16), wi_ref[...],
                    preferred_element_type=jnp.float32) + bi_ref[...]
    inter = 0.5 * inter * (1.0 + lax.erf(inter * jnp.float32(0.7071067811865476)))
    ffn = jnp.dot(inter.astype(jnp.bfloat16), wo2_ref[...],
                  preferred_element_type=jnp.float32) + bo2_ref[...]
    x2 = _layernorm(ffn + x1, ln2g_ref[...], ln2b_ref[...], eps)

    seq_ref[...] = x2                                             # carried activation

    # ---- last layer: pooler = tanh(dense(CLS)) ----
    @pl.when(l == n_layers - 1)
    def _():
        cls = x2[0:1, :]                                          # row 0 of this batch block
        y = jnp.dot(cls.astype(jnp.bfloat16), wp_ref[...],
                    preferred_element_type=jnp.float32) + bp_ref[...]
        pooled_ref[...] = jnp.tanh(y).reshape(1, 1, H)


# ------------------------------ wrapper / forward ------------------------------

def bert_contrastive_forward(params, tokens, masks=None):
    """Matches BERTContrastive.forward: returns the BERT pooled [CLS] output (B, H)."""
    B, S = tokens.shape
    H, I, L = CFG["hidden"], CFG["intermediate"], CFG["layers"]
    V, T, nH = CFG["vocab_size"], CFG["type_vocab"], CFG["heads"]
    if masks is None:
        masks = jnp.ones((B, S), jnp.int32)

    tok_flat = tokens.reshape(B * S, 1).astype(jnp.int32)
    mask3 = masks.astype(jnp.float32).reshape(B, 1, S)

    c2 = lambda b, l: (0, 0)                     # constants (embedding tables, pooler)
    stk = lambda b, l: (l, 0, 0)                 # per-layer stacked weights

    grid_spec = pltpu.PrefetchScalarGridSpec(
        num_scalar_prefetch=0,
        grid=(B, L),                             # batch parallel, layers innermost/resident
        in_specs=[
            pl.BlockSpec((S, 1), lambda b, l: (b, 0)),          # token ids (rows of batch b)
            pl.BlockSpec((1, 1, S), lambda b, l: (b, 0, 0)),    # attention mask
            pl.BlockSpec((V, H), c2),                           # word_emb (bf16)
            pl.BlockSpec((S, H), c2),                           # pos_emb rows 0..S-1
            pl.BlockSpec((T, H), c2),                           # type_emb
            pl.BlockSpec((1, H), c2),                           # emb_ln_g
            pl.BlockSpec((1, H), c2),                           # emb_ln_b
            pl.BlockSpec((None, H, 3 * H), stk),                # wqkv (bf16, Q pre-scaled)
            pl.BlockSpec((None, 1, 3 * H), stk),                # bqkv
            pl.BlockSpec((None, H, H), stk),                    # wo   (bf16)
            pl.BlockSpec((None, 1, H), stk),                    # bo
            pl.BlockSpec((None, 1, H), stk),                    # ln1_g
            pl.BlockSpec((None, 1, H), stk),                    # ln1_b
            pl.BlockSpec((None, H, I), stk),                    # wi   (bf16)
            pl.BlockSpec((None, 1, I), stk),                    # bi
            pl.BlockSpec((None, I, H), stk),                    # wo2  (bf16)
            pl.BlockSpec((None, 1, H), stk),                    # bo2
            pl.BlockSpec((None, 1, H), stk),                    # ln2_g
            pl.BlockSpec((None, 1, H), stk),                    # ln2_b
            pl.BlockSpec((H, H), c2),                           # wp   (bf16)
            pl.BlockSpec((1, H), c2),                           # bp
        ],
        out_specs=[
            pl.BlockSpec((S, H), lambda b, l: (b, 0)),          # last-layer hidden states
            pl.BlockSpec((1, 1, H), lambda b, l: (b, 0, 0)),    # pooled [CLS] output
        ],
    )

    seq_out, pooled = pl.pallas_call(
        functools.partial(_bert_kernel, S=S, nH=nH, eps=CFG["ln_eps"]),
        out_shape=(jax.ShapeDtypeStruct((B * S, H), jnp.float32),
                   jax.ShapeDtypeStruct((B, 1, H), jnp.float32)),
        grid_spec=grid_spec,
        compiler_params=pltpu.CompilerParams(
            dimension_semantics=("parallel", "arbitrary")),
    )(tok_flat, mask3, params["word_emb"], params["pos_emb"], params["type_emb"],
      params["emb_ln_g"], params["emb_ln_b"],
      params["wqkv"], params["bqkv"], params["wo"], params["bo"],
      params["ln1_g"], params["ln1_b"], params["wi"], params["bi"],
      params["wo2"], params["bo2"], params["ln2_g"], params["ln2_b"],
      params["wp"], params["bp"])
    del seq_out                                   # forward() only returns pooled_output
    return pooled[:, 0, :]


# ------------------------------- parameter setup -------------------------------

def init_params(key):
    H, I, L = CFG["hidden"], CFG["intermediate"], CFG["layers"]
    nH = CFG["heads"]
    std = 0.02
    q_scale = 1.0 / math.sqrt(H // nH)            # folded into Q weights (bias is zero)

    def nrm(k, shape):
        return jax.random.normal(k, shape, jnp.float32) * std

    keys = iter(jax.random.split(key, 4 + 6 * L))
    p = dict(
        word_emb=nrm(next(keys), (CFG["vocab_size"], H)).astype(jnp.bfloat16),
        pos_emb=nrm(next(keys), (CFG["max_pos"], H)),
        type_emb=nrm(next(keys), (CFG["type_vocab"], H)),
        emb_ln_g=jnp.ones((1, H), jnp.float32),
        emb_ln_b=jnp.zeros((1, H), jnp.float32),
        wp=nrm(next(keys), (H, H)).astype(jnp.bfloat16),
        bp=jnp.zeros((1, H), jnp.float32),
    )
    wqkv, wo, wi, wo2 = [], [], [], []
    for _ in range(L):
        wq = nrm(next(keys), (H, H)) * q_scale    # 1/sqrt(Dh) score scale folded here
        wk = nrm(next(keys), (H, H))
        wv = nrm(next(keys), (H, H))
        wqkv.append(jnp.concatenate([wq, wk, wv], axis=1))   # fused QKV: (H, 3H)
        wo.append(nrm(next(keys), (H, H)))
        wi.append(nrm(next(keys), (H, I)))
        wo2.append(nrm(next(keys), (I, H)))
    p.update(
        wqkv=jnp.stack(wqkv).astype(jnp.bfloat16),
        bqkv=jnp.zeros((L, 1, 3 * H), jnp.float32),
        wo=jnp.stack(wo).astype(jnp.bfloat16),
        bo=jnp.zeros((L, 1, H), jnp.float32),
        ln1_g=jnp.ones((L, 1, H), jnp.float32),
        ln1_b=jnp.zeros((L, 1, H), jnp.float32),
        wi=jnp.stack(wi).astype(jnp.bfloat16),
        bi=jnp.zeros((L, 1, I), jnp.float32),
        wo2=jnp.stack(wo2).astype(jnp.bfloat16),
        bo2=jnp.zeros((L, 1, H), jnp.float32),
        ln2_g=jnp.ones((L, 1, H), jnp.float32),
        ln2_b=jnp.zeros((L, 1, H), jnp.float32),
    )
    return p


# ------------------------------------ main -------------------------------------

if __name__ == "__main__":
    key = jax.random.PRNGKey(0)
    k_tok, k_par = jax.random.split(key)

    B, S = 2, 8
    tokens = jax.random.randint(k_tok, (B, S), 0, CFG["vocab_size"], dtype=jnp.int32)
    # second sequence has its last 3 positions masked out
    masks = jnp.array([[1] * S, [1] * (S - 3) + [0] * 3], dtype=jnp.int32)

    params = init_params(k_par)

    fwd = jax.jit(bert_contrastive_forward)
    pooled = fwd(params, tokens, masks)
    pooled = jax.block_until_ready(pooled)

    assert pooled.shape == (B, CFG["hidden"])
    assert bool(jnp.all(jnp.isfinite(pooled)))
    print("KERNEL_OK")
</pallas_src>

<mosaic_0001>
module attributes {stable_mosaic.version = 11 : i64} {
  func.func @_bert_kernel(%arg0: i32, %arg1: i32, %arg2: memref<8x1xi32, #tpu.memory_space<vmem>>, %arg3: memref<1x1x8xf32, #tpu.memory_space<vmem>>, %arg4: memref<64x32xbf16, #tpu.memory_space<vmem>>, %arg5: memref<8x32xf32, #tpu.memory_space<vmem>>, %arg6: memref<2x32xf32, #tpu.memory_space<vmem>>, %arg7: memref<1x32xf32, #tpu.memory_space<vmem>>, %arg8: memref<1x32xf32, #tpu.memory_space<vmem>>, %arg9: memref<1x32x96xbf16, #tpu.memory_space<vmem>>, %arg10: memref<1x1x96xf32, #tpu.memory_space<vmem>>, %arg11: memref<1x32x32xbf16, #tpu.memory_space<vmem>>, %arg12: memref<1x1x32xf32, #tpu.memory_space<vmem>>, %arg13: memref<1x1x32xf32, #tpu.memory_space<vmem>>, %arg14: memref<1x1x32xf32, #tpu.memory_space<vmem>>, %arg15: memref<1x32x64xbf16, #tpu.memory_space<vmem>>, %arg16: memref<1x1x64xf32, #tpu.memory_space<vmem>>, %arg17: memref<1x64x32xbf16, #tpu.memory_space<vmem>>, %arg18: memref<1x1x32xf32, #tpu.memory_space<vmem>>, %arg19: memref<1x1x32xf32, #tpu.memory_space<vmem>>, %arg20: memref<1x1x32xf32, #tpu.memory_space<vmem>>, %arg21: memref<32x32xbf16, #tpu.memory_space<vmem>>, %arg22: memref<1x32xf32, #tpu.memory_space<vmem>>, %arg23: memref<8x32xf32, #tpu.memory_space<vmem>>, %arg24: memref<1x1x32xf32, #tpu.memory_space<vmem>>) attributes {dimension_semantics = [#tpu.dimension_semantics<parallel>, #tpu.dimension_semantics<arbitrary>], iteration_bounds = array<i64: 2, 2>, scalar_prefetch = 0 : i64, scratch_operands = 0 : i64, tpu.core_type = #tpu.core_type<tc>, window_params = [{transform_indices = @transform_0, window_bounds = array<i64: 8, 1>}, {transform_indices = @transform_1, window_bounds = array<i64: 1, 1, 8>}, {pipeline_mode = #tpu.pipeline_mode<synchronous>, transform_indices = @transform_2, window_bounds = array<i64: 64, 32>}, {transform_indices = @transform_3, window_bounds = array<i64: 8, 32>}, {pipeline_mode = #tpu.pipeline_mode<synchronous>, transform_indices = @transform_4, window_bounds = array<i64: 2, 32>}, {pipeline_mode = #tpu.pipeline_mode<synchronous>, transform_indices = @transform_5, window_bounds = array<i64: 1, 32>}, {pipeline_mode = #tpu.pipeline_mode<synchronous>, transform_indices = @transform_6, window_bounds = array<i64: 1, 32>}, {transform_indices = @transform_7, window_bounds = array<i64: 1, 32, 96>}, {transform_indices = @transform_8, window_bounds = array<i64: 1, 1, 96>}, {transform_indices = @transform_9, window_bounds = array<i64: 1, 32, 32>}, {transform_indices = @transform_10, window_bounds = array<i64: 1, 1, 32>}, {transform_indices = @transform_11, window_bounds = array<i64: 1, 1, 32>}, {transform_indices = @transform_12, window_bounds = array<i64: 1, 1, 32>}, {transform_indices = @transform_13, window_bounds = array<i64: 1, 32, 64>}, {transform_indices = @transform_14, window_bounds = array<i64: 1, 1, 64>}, {transform_indices = @transform_15, window_bounds = array<i64: 1, 64, 32>}, {transform_indices = @transform_16, window_bounds = array<i64: 1, 1, 32>}, {transform_indices = @transform_17, window_bounds = array<i64: 1, 1, 32>}, {transform_indices = @transform_18, window_bounds = array<i64: 1, 1, 32>}, {pipeline_mode = #tpu.pipeline_mode<synchronous>, transform_indices = @transform_19, window_bounds = array<i64: 32, 32>}, {pipeline_mode = #tpu.pipeline_mode<synchronous>, transform_indices = @transform_20, window_bounds = array<i64: 1, 32>}, {transform_indices = @transform_21, window_bounds = array<i64: 8, 32>}, {transform_indices = @transform_22, window_bounds = array<i64: 1, 1, 32>}]} {
    %c0_i32 = arith.constant 0 : i32
    %0 = arith.cmpi eq, %arg1, %c0_i32 : i32
    %1 = arith.extui %0 : i1 to i32
    %c0_i32_0 = arith.constant 0 : i32
    %2 = arith.cmpi ne, %1, %c0_i32_0 : i32
    scf.if %2 {
      %c0_66 = arith.constant 0 : index
      %c0_67 = arith.constant 0 : index
      %159 = vector.load %arg2[%c0_66, %c0_67] : memref<8x1xi32, #tpu.memory_space<vmem>>, vector<8x1xi32>
      %160 = tpu.iota {dimensions = array<i32: 1>} : vector<8x64xi32>
      %161 = vector.broadcast %159 : vector<8x1xi32> to vector<8x64xi32>
      %162 = arith.cmpi eq, %160, %161 : vector<8x64xi32>
      %163 = arith.extui %162 : vector<8x64xi1> to vector<8x64xi32>
      %164 = arith.sitofp %163 : vector<8x64xi32> to vector<8x64xf32>
      %165 = arith.truncf %164 : vector<8x64xf32> to vector<8x64xbf16>
      %c0_68 = arith.constant 0 : index
      %c0_69 = arith.constant 0 : index
      %166 = vector.load %arg4[%c0_68, %c0_69] : memref<64x32xbf16, #tpu.memory_space<vmem>>, vector<64x32xbf16>
      %cst_70 = arith.constant dense<0.000000e+00> : vector<8x32xf32>
      %167 = tpu.matmul %165, %166, %cst_70 {dimension_numbers = #tpu.dot_dimension_numbers<[1], [0], [0], [1], [0, 0, 1, 1], [], []>} : vector<8x64xbf16>, vector<64x32xbf16>, vector<8x32xf32> -> vector<8x32xf32>
      %c0_71 = arith.constant 0 : index
      %c0_72 = arith.constant 0 : index
      %168 = vector.load %arg5[%c0_71, %c0_72] : memref<8x32xf32, #tpu.memory_space<vmem>>, vector<8x32xf32>
      %169 = arith.addf %167, %168 : vector<8x32xf32>
      %c0_73 = arith.constant 0 : index
      %c0_74 = arith.constant 0 : index
      %170 = vector.load %arg6[%c0_73, %c0_74] : memref<2x32xf32, #tpu.memory_space<vmem>>, vector<1x32xf32>
      %171 = vector.broadcast %170 : vector<1x32xf32> to vector<8x32xf32>
      %172 = arith.addf %169, %171 : vector<8x32xf32>
      %c0_75 = arith.constant 0 : index
      %c0_76 = arith.constant 0 : index
      %173 = vector.load %arg7[%c0_75, %c0_76] : memref<1x32xf32, #tpu.memory_space<vmem>>, vector<1x32xf32>
      %c0_77 = arith.constant 0 : index
      %c0_78 = arith.constant 0 : index
      %174 = vector.load %arg8[%c0_77, %c0_78] : memref<1x32xf32, #tpu.memory_space<vmem>>, vector<1x32xf32>
      %cst_79 = arith.constant dense<0.000000e+00> : vector<8xf32>
      %175 = vector.multi_reduction <add>, %172, %cst_79 [1] : vector<8x32xf32> to vector<8xf32>
      %176 = vector.shape_cast %175 : vector<8xf32> to vector<8x1xf32>
      %cst_80 = arith.constant 3.200000e+01 : f32
      %177 = vector.broadcast %cst_80 : f32 to vector<8x1xf32>
      %178 = arith.divf %176, %177 : vector<8x1xf32>
      %179 = vector.broadcast %178 : vector<8x1xf32> to vector<8x32xf32>
      %180 = arith.subf %172, %179 : vector<8x32xf32>
      %181 = arith.mulf %180, %180 : vector<8x32xf32>
      %cst_81 = arith.constant dense<0.000000e+00> : vector<8xf32>
      %182 = vector.multi_reduction <add>, %181, %cst_81 [1] : vector<8x32xf32> to vector<8xf32>
      %183 = vector.shape_cast %182 : vector<8xf32> to vector<8x1xf32>
      %cst_82 = arith.constant 3.200000e+01 : f32
      %184 = vector.broadcast %cst_82 : f32 to vector<8x1xf32>
      %185 = arith.divf %183, %184 : vector<8x1xf32>
      %cst_83 = arith.constant 9.99999996E-13 : f32
      %186 = vector.broadcast %cst_83 : f32 to vector<8x1xf32>
      %187 = arith.addf %185, %186 : vector<8x1xf32>
      %188 = math.rsqrt %187 : vector<8x1xf32>
      %189 = vector.broadcast %188 : vector<8x1xf32> to vector<8x32xf32>
      %190 = arith.mulf %180, %189 : vector<8x32xf32>
      %191 = vector.broadcast %173 : vector<1x32xf32> to vector<8x32xf32>
      %192 = arith.mulf %190, %191 : vector<8x32xf32>
      %193 = vector.broadcast %174 : vector<1x32xf32> to vector<8x32xf32>
      %194 = arith.addf %192, %193 : vector<8x32xf32>
      %c0_84 = arith.constant 0 : index
      %c0_85 = arith.constant 0 : index
      %195 = vector.load %arg23[%c0_84, %c0_85] : memref<8x32xf32, #tpu.memory_space<vmem>>, vector<8x32xf32>
      tpu.vector_store %arg23[%c0_84, %c0_85], %194 {strides = array<i32>} : memref<8x32xf32, #tpu.memory_space<vmem>>, vector<8x32xf32>,
    } else {
    }
    %c0 = arith.constant 0 : index
    %c0_1 = arith.constant 0 : index
    %3 = vector.load %arg23[%c0, %c0_1] : memref<8x32xf32, #tpu.memory_space<vmem>>, vector<8x32xf32>
    %4 = arith.truncf %3 : vector<8x32xf32> to vector<8x32xbf16>
    %c0_2 = arith.constant 0 : index
    %c0_3 = arith.constant 0 : index
    %c0_4 = arith.constant 0 : index
    %5 = vector.load %arg9[%c0_2, %c0_3, %c0_4] : memref<1x32x96xbf16, #tpu.memory_space<vmem>>, vector<1x32x96xbf16>
    %6 = vector.shape_cast %5 : vector<1x32x96xbf16> to vector<32x96xbf16>
    %cst = arith.constant dense<0.000000e+00> : vector<8x96xf32>
    %7 = tpu.matmul %4, %6, %cst {dimension_numbers = #tpu.dot_dimension_numbers<[1], [0], [0], [1], [0, 0, 1, 1], [], []>} : vector<8x32xbf16>, vector<32x96xbf16>, vector<8x96xf32> -> vector<8x96xf32>
    %c0_5 = arith.constant 0 : index
    %c0_6 = arith.constant 0 : index
    %c0_7 = arith.constant 0 : index
    %8 = vector.load %arg10[%c0_5, %c0_6, %c0_7] : memref<1x1x96xf32, #tpu.memory_space<vmem>>, vector<1x1x96xf32>
    %9 = vector.shape_cast %8 : vector<1x1x96xf32> to vector<1x96xf32>
    %10 = vector.broadcast %9 : vector<1x96xf32> to vector<8x96xf32>
    %11 = arith.addf %7, %10 : vector<8x96xf32>
    %c0_8 = arith.constant 0 : index
    %c0_9 = arith.constant 0 : index
    %c0_10 = arith.constant 0 : index
    %12 = vector.load %arg3[%c0_8, %c0_9, %c0_10] : memref<1x1x8xf32, #tpu.memory_space<vmem>>, vector<1x1x8xf32>
    %13 = vector.shape_cast %12 : vector<1x1x8xf32> to vector<1x8xf32>
    %cst_11 = arith.constant 1.000000e+00 : f32
    %14 = vector.broadcast %cst_11 : f32 to vector<1x8xf32>
    %15 = arith.subf %14, %13 : vector<1x8xf32>
    %cst_12 = arith.constant -1.000000e+04 : f32
    %16 = vector.broadcast %cst_12 : f32 to vector<1x8xf32>
    %17 = arith.mulf %15, %16 : vector<1x8xf32>
    %18 = vector.extract_strided_slice %11 {offsets = [0, 0], sizes = [8, 8], strides = [1, 1]} : vector<8x96xf32> to vector<8x8xf32>
    %19 = vector.extract_strided_slice %11 {offsets = [0, 8], sizes = [8, 8], strides = [1, 1]} : vector<8x96xf32> to vector<8x8xf32>
    %20 = vector.extract_strided_slice %11 {offsets = [0, 16], sizes = [8, 8], strides = [1, 1]} : vector<8x96xf32> to vector<8x8xf32>
    %21 = vector.extract_strided_slice %11 {offsets = [0, 24], sizes = [8, 8], strides = [1, 1]} : vector<8x96xf32> to vector<8x8xf32>
    %22 = vector.shape_cast %18 : vector<8x8xf32> to vector<1x8x8xf32>
    %23 = vector.shape_cast %19 : vector<8x8xf32> to vector<1x8x8xf32>
    %24 = vector.shape_cast %20 : vector<8x8xf32> to vector<1x8x8xf32>
    %25 = vector.shape_cast %21 : vector<8x8xf32> to vector<1x8x8xf32>
    %26 = tpu.concatenate %22, %23, %24, %25 in 0 : vector<1x8x8xf32>, vector<1x8x8xf32>, vector<1x8x8xf32>, vector<1x8x8xf32> -> vector<4x8x8xf32>
    %27 = arith.truncf %26 : vector<4x8x8xf32> to vector<4x8x8xbf16>
    %28 = vector.extract_strided_slice %11 {offsets = [0, 32], sizes = [8, 8], strides = [1, 1]} : vector<8x96xf32> to vector<8x8xf32>
    %29 = vector.extract_strided_slice %11 {offsets = [0, 40], sizes = [8, 8], strides = [1, 1]} : vector<8x96xf32> to vector<8x8xf32>
    %30 = vector.extract_strided_slice %11 {offsets = [0, 48], sizes = [8, 8], strides = [1, 1]} : vector<8x96xf32> to vector<8x8xf32>
    %31 = vector.extract_strided_slice %11 {offsets = [0, 56], sizes = [8, 8], strides = [1, 1]} : vector<8x96xf32> to vector<8x8xf32>
    %32 = vector.shape_cast %28 : vector<8x8xf32> to vector<1x8x8xf32>
    %33 = vector.shape_cast %29 : vector<8x8xf32> to vector<1x8x8xf32>
    %34 = vector.shape_cast %30 : vector<8x8xf32> to vector<1x8x8xf32>
    %35 = vector.shape_cast %31 : vector<8x8xf32> to vector<1x8x8xf32>
    %36 = tpu.concatenate %32, %33, %34, %35 in 0 : vector<1x8x8xf32>, vector<1x8x8xf32>, vector<1x8x8xf32>, vector<1x8x8xf32> -> vector<4x8x8xf32>
    %37 = arith.truncf %36 : vector<4x8x8xf32> to vector<4x8x8xbf16>
    %38 = vector.extract_strided_slice %11 {offsets = [0, 64], sizes = [8, 8], strides = [1, 1]} : vector<8x96xf32> to vector<8x8xf32>
    %39 = vector.extract_strided_slice %11 {offsets = [0, 72], sizes = [8, 8], strides = [1, 1]} : vector<8x96xf32> to vector<8x8xf32>
    %40 = vector.extract_strided_slice %11 {offsets = [0, 80], sizes = [8, 8], strides = [1, 1]} : vector<8x96xf32> to vector<8x8xf32>
    %41 = vector.extract_strided_slice %11 {offsets = [0, 88], sizes = [8, 8], strides = [1, 1]} : vector<8x96xf32> to vector<8x8xf32>
    %42 = vector.shape_cast %38 : vector<8x8xf32> to vector<1x8x8xf32>
    %43 = vector.shape_cast %39 : vector<8x8xf32> to vector<1x8x8xf32>
    %44 = vector.shape_cast %40 : vector<8x8xf32> to vector<1x8x8xf32>
    %45 = vector.shape_cast %41 : vector<8x8xf32> to vector<1x8x8xf32>
    %46 = tpu.concatenate %42, %43, %44, %45 in 0 : vector<1x8x8xf32>, vector<1x8x8xf32>, vector<1x8x8xf32>, vector<1x8x8xf32> -> vector<4x8x8xf32>
    %47 = arith.truncf %46 : vector<4x8x8xf32> to vector<4x8x8xbf16>
    "tpu.trace_start"() <{level = 10 : i32, message = "hqd,hkd->hqk"}> : () -> ()
    %cst_13 = arith.constant dense<0.000000e+00> : vector<4x8x8xf32>
    %48 = tpu.matmul %27, %37, %cst_13 {dimension_numbers = #tpu.dot_dimension_numbers<[2], [2], [1], [1], [0, 0, 0, 1, 1, 1], [0], [0]>} : vector<4x8x8xbf16>, vector<4x8x8xbf16>, vector<4x8x8xf32> -> vector<4x8x8xf32>
    "tpu.trace_stop"() : () -> ()
    %49 = vector.shape_cast %17 : vector<1x8xf32> to vector<1x1x8xf32>
    %50 = vector.broadcast %49 : vector<1x1x8xf32> to vector<4x8x8xf32>
    %51 = arith.addf %48, %50 : vector<4x8x8xf32>
    %cst_14 = arith.constant dense<0xFF800000> : vector<4x8xf32>
    %52 = vector.multi_reduction <maximumf>, %51, %cst_14 [2] : vector<4x8x8xf32> to vector<4x8xf32>
    %53 = vector.shape_cast %52 : vector<4x8xf32> to vector<4x8x1xf32>
    %54 = vector.broadcast %53 : vector<4x8x1xf32> to vector<4x8x8xf32>
    %55 = arith.subf %51, %54 : vector<4x8x8xf32>
    %56 = math.exp %55 : vector<4x8x8xf32>
    %cst_15 = arith.constant dense<0.000000e+00> : vector<4x8xf32>
    %57 = vector.multi_reduction <add>, %56, %cst_15 [2] : vector<4x8x8xf32> to vector<4x8xf32>
    %58 = vector.shape_cast %57 : vector<4x8xf32> to vector<4x8x1xf32>
    %59 = tpu.reciprocal %58 {approx = true} : vector<4x8x1xf32> -> vector<4x8x1xf32>
    %60 = vector.broadcast %59 : vector<4x8x1xf32> to vector<4x8x8xf32>
    %61 = arith.mulf %56, %60 : vector<4x8x8xf32>
    %62 = arith.truncf %61 : vector<4x8x8xf32> to vector<4x8x8xbf16>
    "tpu.trace_start"() <{level = 10 : i32, message = "hqk,hkd->hqd"}> : () -> ()
    %cst_16 = arith.constant dense<0.000000e+00> : vector<4x8x8xf32>
    %63 = tpu.matmul %62, %47, %cst_16 {dimension_numbers = #tpu.dot_dimension_numbers<[2], [1], [1], [2], [0, 0, 0, 1, 1, 2], [0], [0]>} : vector<4x8x8xbf16>, vector<4x8x8xbf16>, vector<4x8x8xf32> -> vector<4x8x8xf32>
    "tpu.trace_stop"() : () -> ()
    %64 = vector.extract_strided_slice %63 {offsets = [0, 0, 0], sizes = [1, 8, 8], strides = [1, 1, 1]} : vector<4x8x8xf32> to vector<1x8x8xf32>
    %65 = vector.shape_cast %64 : vector<1x8x8xf32> to vector<8x8xf32>
    %66 = vector.extract_strided_slice %63 {offsets = [1, 0, 0], sizes = [1, 8, 8], strides = [1, 1, 1]} : vector<4x8x8xf32> to vector<1x8x8xf32>
    %67 = vector.shape_cast %66 : vector<1x8x8xf32> to vector<8x8xf32>
    %68 = vector.extract_strided_slice %63 {offsets = [2, 0, 0], sizes = [1, 8, 8], strides = [1, 1, 1]} : vector<4x8x8xf32> to vector<1x8x8xf32>
    %69 = vector.shape_cast %68 : vector<1x8x8xf32> to vector<8x8xf32>
    %70 = vector.extract_strided_slice %63 {offsets = [3, 0, 0], sizes = [1, 8, 8], strides = [1, 1, 1]} : vector<4x8x8xf32> to vector<1x8x8xf32>
    %71 = vector.shape_cast %70 : vector<1x8x8xf32> to vector<8x8xf32>
    %72 = tpu.concatenate %65, %67, %69, %71 in 1 : vector<8x8xf32>, vector<8x8xf32>, vector<8x8xf32>, vector<8x8xf32> -> vector<8x32xf32>
    %73 = arith.truncf %72 : vector<8x32xf32> to vector<8x32xbf16>
    %c0_17 = arith.constant 0 : index
    %c0_18 = arith.constant 0 : index
    %c0_19 = arith.constant 0 : index
    %74 = vector.load %arg11[%c0_17, %c0_18, %c0_19] : memref<1x32x32xbf16, #tpu.memory_space<vmem>>, vector<1x32x32xbf16>
    %75 = vector.shape_cast %74 : vector<1x32x32xbf16> to vector<32x32xbf16>
    %cst_20 = arith.constant dense<0.000000e+00> : vector<8x32xf32>
    %76 = tpu.matmul %73, %75, %cst_20 {dimension_numbers = #tpu.dot_dimension_numbers<[1], [0], [0], [1], [0, 0, 1, 1], [], []>} : vector<8x32xbf16>, vector<32x32xbf16>, vector<8x32xf32> -> vector<8x32xf32>
    %c0_21 = arith.constant 0 : index
    %c0_22 = arith.constant 0 : index
    %c0_23 = arith.constant 0 : index
    %77 = vector.load %arg12[%c0_21, %c0_22, %c0_23] : memref<1x1x32xf32, #tpu.memory_space<vmem>>, vector<1x1x32xf32>
    %78 = vector.shape_cast %77 : vector<1x1x32xf32> to vector<1x32xf32>
    %79 = vector.broadcast %78 : vector<1x32xf32> to vector<8x32xf32>
    %80 = arith.addf %76, %79 : vector<8x32xf32>
    %81 = arith.addf %80, %3 : vector<8x32xf32>
    %c0_24 = arith.constant 0 : index
    %c0_25 = arith.constant 0 : index
    %c0_26 = arith.constant 0 : index
    %82 = vector.load %arg13[%c0_24, %c0_25, %c0_26] : memref<1x1x32xf32, #tpu.memory_space<vmem>>, vector<1x1x32xf32>
    %83 = vector.shape_cast %82 : vector<1x1x32xf32> to vector<1x32xf32>
    %c0_27 = arith.constant 0 : index
    %c0_28 = arith.constant 0 : index
    %c0_29 = arith.constant 0 : index
    %84 = vector.load %arg14[%c0_27, %c0_28, %c0_29] : memref<1x1x32xf32, #tpu.memory_space<vmem>>, vector<1x1x32xf32>
    %85 = vector.shape_cast %84 : vector<1x1x32xf32> to vector<1x32xf32>
    %cst_30 = arith.constant dense<0.000000e+00> : vector<8xf32>
    %86 = vector.multi_reduction <add>, %81, %cst_30 [1] : vector<8x32xf32> to vector<8xf32>
    %87 = vector.shape_cast %86 : vector<8xf32> to vector<8x1xf32>
    %cst_31 = arith.constant 3.200000e+01 : f32
    %88 = vector.broadcast %cst_31 : f32 to vector<8x1xf32>
    %89 = arith.divf %87, %88 : vector<8x1xf32>
    %90 = vector.broadcast %89 : vector<8x1xf32> to vector<8x32xf32>
    %91 = arith.subf %81, %90 : vector<8x32xf32>
    %92 = arith.mulf %91, %91 : vector<8x32xf32>
    %cst_32 = arith.constant dense<0.000000e+00> : vector<8xf32>
    %93 = vector.multi_reduction <add>, %92, %cst_32 [1] : vector<8x32xf32> to vector<8xf32>
    %94 = vector.shape_cast %93 : vector<8xf32> to vector<8x1xf32>
    %cst_33 = arith.constant 3.200000e+01 : f32
    %95 = vector.broadcast %cst_33 : f32 to vector<8x1xf32>
    %96 = arith.divf %94, %95 : vector<8x1xf32>
    %cst_34 = arith.constant 9.99999996E-13 : f32
    %97 = vector.broadcast %cst_34 : f32 to vector<8x1xf32>
    %98 = arith.addf %96, %97 : vector<8x1xf32>
    %99 = math.rsqrt %98 : vector<8x1xf32>
    %100 = vector.broadcast %99 : vector<8x1xf32> to vector<8x32xf32>
    %101 = arith.mulf %91, %100 : vector<8x32xf32>
    %102 = vector.broadcast %83 : vector<1x32xf32> to vector<8x32xf32>
    %103 = arith.mulf %101, %102 : vector<8x32xf32>
    %104 = vector.broadcast %85 : vector<1x32xf32> to vector<8x32xf32>
    %105 = arith.addf %103, %104 : vector<8x32xf32>
    %106 = arith.truncf %105 : vector<8x32xf32> to vector<8x32xbf16>
    %c0_35 = arith.constant 0 : index
    %c0_36 = arith.constant 0 : index
    %c0_37 = arith.constant 0 : index
    %107 = vector.load %arg15[%c0_35, %c0_36, %c0_37] : memref<1x32x64xbf16, #tpu.memory_space<vmem>>, vector<1x32x64xbf16>
    %108 = vector.shape_cast %107 : vector<1x32x64xbf16> to vector<32x64xbf16>
    %cst_38 = arith.constant dense<0.000000e+00> : vector<8x64xf32>
    %109 = tpu.matmul %106, %108, %cst_38 {dimension_numbers = #tpu.dot_dimension_numbers<[1], [0], [0], [1], [0, 0, 1, 1], [], []>} : vector<8x32xbf16>, vector<32x64xbf16>, vector<8x64xf32> -> vector<8x64xf32>
    %c0_39 = arith.constant 0 : index
    %c0_40 = arith.constant 0 : index
    %c0_41 = arith.constant 0 : index
    %110 = vector.load %arg16[%c0_39, %c0_40, %c0_41] : memref<1x1x64xf32, #tpu.memory_space<vmem>>, vector<1x1x64xf32>
    %111 = vector.shape_cast %110 : vector<1x1x64xf32> to vector<1x64xf32>
    %112 = vector.broadcast %111 : vector<1x64xf32> to vector<8x64xf32>
    %113 = arith.addf %109, %112 : vector<8x64xf32>
    %cst_42 = arith.constant 5.000000e-01 : f32
    %114 = vector.broadcast %cst_42 : f32 to vector<8x64xf32>
    %115 = arith.mulf %114, %113 : vector<8x64xf32>
    %cst_43 = arith.constant 0.707106769 : f32
    %116 = vector.broadcast %cst_43 : f32 to vector<8x64xf32>
    %117 = arith.mulf %113, %116 : vector<8x64xf32>
    %118 = math.erf %117 : vector<8x64xf32>
    %cst_44 = arith.constant 1.000000e+00 : f32
    %119 = vector.broadcast %cst_44 : f32 to vector<8x64xf32>
    %120 = arith.addf %119, %118 : vector<8x64xf32>
    %121 = arith.mulf %115, %120 : vector<8x64xf32>
    %122 = arith.truncf %121 : vector<8x64xf32> to vector<8x64xbf16>
    %c0_45 = arith.constant 0 : index
    %c0_46 = arith.constant 0 : index
    %c0_47 = arith.constant 0 : index
    %123 = vector.load %arg17[%c0_45, %c0_46, %c0_47] : memref<1x64x32xbf16, #tpu.memory_space<vmem>>, vector<1x64x32xbf16>
    %124 = vector.shape_cast %123 : vector<1x64x32xbf16> to vector<64x32xbf16>
    %cst_48 = arith.constant dense<0.000000e+00> : vector<8x32xf32>
    %125 = tpu.matmul %122, %124, %cst_48 {dimension_numbers = #tpu.dot_dimension_numbers<[1], [0], [0], [1], [0, 0, 1, 1], [], []>} : vector<8x64xbf16>, vector<64x32xbf16>, vector<8x32xf32> -> vector<8x32xf32>
    %c0_49 = arith.constant 0 : index
    %c0_50 = arith.constant 0 : index
    %c0_51 = arith.constant 0 : index
    %126 = vector.load %arg18[%c0_49, %c0_50, %c0_51] : memref<1x1x32xf32, #tpu.memory_space<vmem>>, vector<1x1x32xf32>
    %127 = vector.shape_cast %126 : vector<1x1x32xf32> to vector<1x32xf32>
    %128 = vector.broadcast %127 : vector<1x32xf32> to vector<8x32xf32>
    %129 = arith.addf %125, %128 : vector<8x32xf32>
    %130 = arith.addf %129, %105 : vector<8x32xf32>
    %c0_52 = arith.constant 0 : index
    %c0_53 = arith.constant 0 : index
    %c0_54 = arith.constant 0 : index
    %131 = vector.load %arg19[%c0_52, %c0_53, %c0_54] : memref<1x1x32xf32, #tpu.memory_space<vmem>>, vector<1x1x32xf32>
    %132 = vector.shape_cast %131 : vector<1x1x32xf32> to vector<1x32xf32>
    %c0_55 = arith.constant 0 : index
    %c0_56 = arith.constant 0 : index
    %c0_57 = arith.constant 0 : index
    %133 = vector.load %arg20[%c0_55, %c0_56, %c0_57] : memref<1x1x32xf32, #tpu.memory_space<vmem>>, vector<1x1x32xf32>
    %134 = vector.shape_cast %133 : vector<1x1x32xf32> to vector<1x32xf32>
    %cst_58 = arith.constant dense<0.000000e+00> : vector<8xf32>
    %135 = vector.multi_reduction <add>, %130, %cst_58 [1] : vector<8x32xf32> to vector<8xf32>
    %136 = vector.shape_cast %135 : vector<8xf32> to vector<8x1xf32>
    %cst_59 = arith.constant 3.200000e+01 : f32
    %137 = vector.broadcast %cst_59 : f32 to vector<8x1xf32>
    %138 = arith.divf %136, %137 : vector<8x1xf32>
    %139 = vector.broadcast %138 : vector<8x1xf32> to vector<8x32xf32>
    %140 = arith.subf %130, %139 : vector<8x32xf32>
    %141 = arith.mulf %140, %140 : vector<8x32xf32>
    %cst_60 = arith.constant dense<0.000000e+00> : vector<8xf32>
    %142 = vector.multi_reduction <add>, %141, %cst_60 [1] : vector<8x32xf32> to vector<8xf32>
    %143 = vector.shape_cast %142 : vector<8xf32> to vector<8x1xf32>
    %cst_61 = arith.constant 3.200000e+01 : f32
    %144 = vector.broadcast %cst_61 : f32 to vector<8x1xf32>
    %145 = arith.divf %143, %144 : vector<8x1xf32>
    %cst_62 = arith.constant 9.99999996E-13 : f32
    %146 = vector.broadcast %cst_62 : f32 to vector<8x1xf32>
    %147 = arith.addf %145, %146 : vector<8x1xf32>
    %148 = math.rsqrt %147 : vector<8x1xf32>
    %149 = vector.broadcast %148 : vector<8x1xf32> to vector<8x32xf32>
    %150 = arith.mulf %140, %149 : vector<8x32xf32>
    %151 = vector.broadcast %132 : vector<1x32xf32> to vector<8x32xf32>
    %152 = arith.mulf %150, %151 : vector<8x32xf32>
    %153 = vector.broadcast %134 : vector<1x32xf32> to vector<8x32xf32>
    %154 = arith.addf %152, %153 : vector<8x32xf32>
    %c0_63 = arith.constant 0 : index
    %c0_64 = arith.constant 0 : index
    %155 = vector.load %arg23[%c0_63, %c0_64] : memref<8x32xf32, #tpu.memory_space<vmem>>, vector<8x32xf32>
    tpu.vector_store %arg23[%c0_63, %c0_64], %154 {strides = array<i32>} : memref<8x32xf32, #tpu.memory_space<vmem>>, vector<8x32xf32>,
    %c1_i32 = arith.constant 1 : i32
    %156 = arith.cmpi eq, %arg1, %c1_i32 : i32
    %157 = arith.extui %156 : i1 to i32
    %c0_i32_65 = arith.constant 0 : i32
    %158 = arith.cmpi ne, %157, %c0_i32_65 : i32
    scf.if %158 {
      %159 = vector.extract_strided_slice %154 {offsets = [0, 0], sizes = [1, 32], strides = [1, 1]} : vector<8x32xf32> to vector<1x32xf32>
      %160 = arith.truncf %159 : vector<1x32xf32> to vector<1x32xbf16>
      %c0_66 = arith.constant 0 : index
      %c0_67 = arith.constant 0 : index
      %161 = vector.load %arg21[%c0_66, %c0_67] : memref<32x32xbf16, #tpu.memory_space<vmem>>, vector<32x32xbf16>
      %cst_68 = arith.constant dense<0.000000e+00> : vector<1x32xf32>
      %162 = tpu.matmul %160, %161, %cst_68 {dimension_numbers = #tpu.dot_dimension_numbers<[1], [0], [0], [1], [0, 0, 1, 1], [], []>} : vector<1x32xbf16>, vector<32x32xbf16>, vector<1x32xf32> -> vector<1x32xf32>
      %c0_69 = arith.constant 0 : index
      %c0_70 = arith.constant 0 : index
      %163 = vector.load %arg22[%c0_69, %c0_70] : memref<1x32xf32, #tpu.memory_space<vmem>>, vector<1x32xf32>
      %164 = arith.addf %162, %163 : vector<1x32xf32>
      %165 = math.tanh %164 : vector<1x32xf32>
      %166 = vector.shape_cast %165 : vector<1x32xf32> to vector<1x1x32xf32>
      %c0_71 = arith.constant 0 : index
      %c0_72 = arith.constant 0 : index
      %c0_73 = arith.constant 0 : index
      %167 = vector.load %arg24[%c0_71, %c0_72, %c0_73] : memref<1x1x32xf32, #tpu.memory_space<vmem>>, vector<1x1x32xf32>
      tpu.vector_store %arg24[%c0_71, %c0_72, %c0_73], %166 {strides = array<i32>} : memref<1x1x32xf32, #tpu.memory_space<vmem>>, vector<1x1x32xf32>,
    } else {
    }
    return
  }
  func.func @transform_0(%arg0: i32, %arg1: i32) -> (i32, i32) {
    %c0_i32 = arith.constant 0 : i32
    %c0_i32_0 = arith.constant 0 : i32
    return %arg0, %c0_i32 : i32, i32
  }
  func.func @transform_1(%arg0: i32, %arg1: i32) -> (i32, i32, i32) {
    %c0_i32 = arith.constant 0 : i32
    %c0_i32_0 = arith.constant 0 : i32
    %c0_i32_1 = arith.constant 0 : i32
    return %arg0, %c0_i32, %c0_i32_0 : i32, i32, i32
  }
  func.func @transform_2(%arg0: i32, %arg1: i32) -> (i32, i32) {
    %c0_i32 = arith.constant 0 : i32
    %c0_i32_0 = arith.constant 0 : i32
    %c0_i32_1 = arith.constant 0 : i32
    return %c0_i32, %c0_i32_0 : i32, i32
  }
  func.func @transform_3(%arg0: i32, %arg1: i32) -> (i32, i32) {
    %c0_i32 = arith.constant 0 : i32
    %c0_i32_0 = arith.constant 0 : i32
    %c0_i32_1 = arith.constant 0 : i32
    return %c0_i32, %c0_i32_0 : i32, i32
  }
  func.func @transform_4(%arg0: i32, %arg1: i32) -> (i32, i32) {
    %c0_i32 = arith.constant 0 : i32
    %c0_i32_0 = arith.constant 0 : i32
    %c0_i32_1 = arith.constant 0 : i32
    return %c0_i32, %c0_i32_0 : i32, i32
  }
  func.func @transform_5(%arg0: i32, %arg1: i32) -> (i32, i32) {
    %c0_i32 = arith.constant 0 : i32
    %c0_i32_0 = arith.constant 0 : i32
    %c0_i32_1 = arith.constant 0 : i32
    return %c0_i32, %c0_i32_0 : i32, i32
  }
  func.func @transform_6(%arg0: i32, %arg1: i32) -> (i32, i32) {
    %c0_i32 = arith.constant 0 : i32
    %c0_i32_0 = arith.constant 0 : i32
    %c0_i32_1 = arith.constant 0 : i32
    return %c0_i32, %c0_i32_0 : i32, i32
  }
  func.func @transform_7(%arg0: i32, %arg1: i32) -> (i32, i32, i32) {
    %c0_i32 = arith.constant 0 : i32
    %c0_i32_0 = arith.constant 0 : i32
    %c0_i32_1 = arith.constant 0 : i32
    return %arg1, %c0_i32, %c0_i32_0 : i32, i32, i32
  }
  func.func @transform_8(%arg0: i32, %arg1: i32) -> (i32, i32, i32) {
    %c0_i32 = arith.constant 0 : i32
    %c0_i32_0 = arith.constant 0 : i32
    %c0_i32_1 = arith.constant 0 : i32
    return %arg1, %c0_i32, %c0_i32_0 : i32, i32, i32
  }
  func.func @transform_9(%arg0: i32, %arg1: i32) -> (i32, i32, i32) {
    %c0_i32 = arith.constant 0 : i32
    %c0_i32_0 = arith.constant 0 : i32
    %c0_i32_1 = arith.constant 0 : i32
    return %arg1, %c0_i32, %c0_i32_0 : i32, i32, i32
  }
  func.func @transform_10(%arg0: i32, %arg1: i32) -> (i32, i32, i32) {
    %c0_i32 = arith.constant 0 : i32
    %c0_i32_0 = arith.constant 0 : i32
    %c0_i32_1 = arith.constant 0 : i32
    return %arg1, %c0_i32, %c0_i32_0 : i32, i32, i32
  }
  func.func @transform_11(%arg0: i32, %arg1: i32) -> (i32, i32, i32) {
    %c0_i32 = arith.constant 0 : i32
    %c0_i32_0 = arith.constant 0 : i32
    %c0_i32_1 = arith.constant 0 : i32
    return %arg1, %c0_i32, %c0_i32_0 : i32, i32, i32
  }
  func.func @transform_12(%arg0: i32, %arg1: i32) -> (i32, i32, i32) {
    %c0_i32 = arith.constant 0 : i32
    %c0_i32_0 = arith.constant 0 : i32
    %c0_i32_1 = arith.constant 0 : i32
    return %arg1, %c0_i32, %c0_i32_0 : i32, i32, i32
  }
  func.func @transform_13(%arg0: i32, %arg1: i32) -> (i32, i32, i32) {
    %c0_i32 = arith.constant 0 : i32
    %c0_i32_0 = arith.constant 0 : i32
    %c0_i32_1 = arith.constant 0 : i32
    return %arg1, %c0_i32, %c0_i32_0 : i32, i32, i32
  }
  func.func @transform_14(%arg0: i32, %arg1: i32) -> (i32, i32, i32) {
    %c0_i32 = arith.constant 0 : i32
    %c0_i32_0 = arith.constant 0 : i32
    %c0_i32_1 = arith.constant 0 : i32
    return %arg1, %c0_i32, %c0_i32_0 : i32, i32, i32
  }
  func.func @transform_15(%arg0: i32, %arg1: i32) -> (i32, i32, i32) {
    %c0_i32 = arith.constant 0 : i32
    %c0_i32_0 = arith.constant 0 : i32
    %c0_i32_1 = arith.constant 0 : i32
    return %arg1, %c0_i32, %c0_i32_0 : i32, i32, i32
  }
  func.func @transform_16(%arg0: i32, %arg1: i32) -> (i32, i32, i32) {
    %c0_i32 = arith.constant 0 : i32
    %c0_i32_0 = arith.constant 0 : i32
    %c0_i32_1 = arith.constant 0 : i32
    return %arg1, %c0_i32, %c0_i32_0 : i32, i32, i32
  }
  func.func @transform_17(%arg0: i32, %arg1: i32) -> (i32, i32, i32) {
    %c0_i32 = arith.constant 0 : i32
    %c0_i32_0 = arith.constant 0 : i32
    %c0_i32_1 = arith.constant 0 : i32
    return %arg1, %c0_i32, %c0_i32_0 : i32, i32, i32
  }
  func.func @transform_18(%arg0: i32, %arg1: i32) -> (i32, i32, i32) {
    %c0_i32 = arith.constant 0 : i32
    %c0_i32_0 = arith.constant 0 : i32
    %c0_i32_1 = arith.constant 0 : i32
    return %arg1, %c0_i32, %c0_i32_0 : i32, i32, i32
  }
  func.func @transform_19(%arg0: i32, %arg1: i32) -> (i32, i32) {
    %c0_i32 = arith.constant 0 : i32
    %c0_i32_0 = arith.constant 0 : i32
    %c0_i32_1 = arith.constant 0 : i32
    return %c0_i32, %c0_i32_0 : i32, i32
  }
  func.func @transform_20(%arg0: i32, %arg1: i32) -> (i32, i32) {
    %c0_i32 = arith.constant 0 : i32
    %c0_i32_0 = arith.constant 0 : i32
    %c0_i32_1 = arith.constant 0 : i32
    return %c0_i32, %c0_i32_0 : i32, i32
  }
  func.func @transform_21(%arg0: i32, %arg1: i32) -> (i32, i32) {
    %c0_i32 = arith.constant 0 : i32
    %c0_i32_0 = arith.constant 0 : i32
    return %arg0, %c0_i32 : i32, i32
  }
  func.func @transform_22(%arg0: i32, %arg1: i32) -> (i32, i32, i32) {
    %c0_i32 = arith.constant 0 : i32
    %c0_i32_0 = arith.constant 0 : i32
    %c0_i32_1 = arith.constant 0 : i32
    return %arg0, %c0_i32, %c0_i32_0 : i32, i32, i32
  }
}

</mosaic_0001>

<llo_original>
// kernel: bert_contrastive_forward.1
$region0: #{bert_contrastive_forward.1}
  #allocation0 [shape = 'u32[]', space=smem, size = 0x4, offset = 0x4, fixed_abs, tag = 'smem constant byte address 0x4 - core index']
  #allocation1 [shape = 'u32[72,128]{1,0:T(1,128)}', space=vmem, size = 0x9000, scoped, tag = 'internal scratch']
  %s0 = inlined_call_operand.vmem [shape: s32[16,1], index: 0, kind: input, shape index: {}]
  %s1 = inlined_call_operand.vmem [shape: f32[2,1,8], index: 1, kind: input, shape index: {}]
  %s2 = inlined_call_operand.vmem [shape: bf16[64,32], index: 2, kind: input, shape index: {}]
  %s3 = inlined_call_operand.vmem [shape: f32[16,32], index: 3, kind: input, shape index: {}]
  %s4 = inlined_call_operand.vmem [shape: f32[2,32], index: 4, kind: input, shape index: {}]
  %s5 = inlined_call_operand.hbm [shape: f32[1,32], index: 5, kind: input, shape index: {}]
  %s6 = inlined_call_operand.hbm [shape: f32[1,32], index: 6, kind: input, shape index: {}]
  %s7 = inlined_call_operand.vmem [shape: bf16[2,32,96], index: 7, kind: input, shape index: {}]
  %s8 = inlined_call_operand.vmem [shape: f32[2,1,96], index: 8, kind: input, shape index: {}]
  %s9 = inlined_call_operand.vmem [shape: bf16[2,32,32], index: 9, kind: input, shape index: {}]
  %s10 = inlined_call_operand.vmem [shape: f32[2,1,32], index: 10, kind: input, shape index: {}]
  %s11 = inlined_call_operand.vmem [shape: f32[2,1,32], index: 11, kind: input, shape index: {}]
  %s12 = inlined_call_operand.vmem [shape: f32[2,1,32], index: 12, kind: input, shape index: {}]
  %s13 = inlined_call_operand.vmem [shape: bf16[2,32,64], index: 13, kind: input, shape index: {}]
  %s14 = inlined_call_operand.vmem [shape: f32[2,1,64], index: 14, kind: input, shape index: {}]
  %s15 = inlined_call_operand.vmem [shape: bf16[2,64,32], index: 15, kind: input, shape index: {}]
  %s16 = inlined_call_operand.hbm [shape: f32[2,1,32], index: 16, kind: input, shape index: {}]
  %s17 = inlined_call_operand.hbm [shape: f32[2,1,32], index: 17, kind: input, shape index: {}]
  %s18 = inlined_call_operand.hbm [shape: f32[2,1,32], index: 18, kind: input, shape index: {}]
  %s19 = inlined_call_operand.hbm [shape: bf16[32,32], index: 19, kind: input, shape index: {}]
  %s20 = inlined_call_operand.hbm [shape: f32[1,32], index: 20, kind: input, shape index: {}]
  %s21 = inlined_call_operand.hbm [shape: f32[16,32], index: 21, kind: output, shape index: {0}]
  %s22 = inlined_call_operand.hbm [shape: f32[2,1,32], index: 22, kind: output, shape index: {1}]
  %23 = xla_tuple %s21, %s22
  %s24 = sld [smem:[#allocation0]]
  $region161: #{bert_contrastive_forward.1} parent=0
    _
  %s26 = ssub.s32 1, %s24
  %s27 = scalar_select 0, %s26, %s24
  $region1: #{bert_contrastive_forward.1} parent=0
    #allocation2 [shape = 'u8[512]{0}', space=vmem, size = 0x400, scoped, tag = 'input window, operand 5, single buffered']
    #allocation3 [shape = 's32[2]{0}', space=sflag, size = 0x8, scoped, tag = 'scoped memory for bert_contrastive_forward.1']
    #allocation4 [shape = 's32[2]{0}', space=sflag, size = 0x8, scoped, tag = 'scoped memory for bert_contrastive_forward.1']
    #allocation5 [shape = 'u8[512]{0}', space=vmem, size = 0x400, scoped, tag = 'input window, operand 6, single buffered']
    #allocation6 [shape = 's32[1]{0}', space=sflag, size = 0x4, scoped, tag = 'scoped memory for bert_contrastive_forward.1']
    #allocation7 [shape = 'u8[1024]{0}', space=vmem, size = 0x400, scoped, tag = 'input window, operand 16']
    #allocation8 [shape = 'u8[1024]{0}', space=vmem, size = 0x400, scoped, tag = 'input window, operand 17']
    #allocation9 [shape = 'u8[1024]{0}', space=vmem, size = 0x400, scoped, tag = 'input window, operand 18']
    #allocation10 [shape = 'u8[8192]{0}', space=vmem, size = 0x2000, scoped, tag = 'input window, operand 19, single buffered']
    #allocation11 [shape = 'u8[512]{0}', space=vmem, size = 0x400, scoped, tag = 'input window, operand 20, single buffered']
    #allocation12 [shape = 's32[1]{0}', space=sflag, size = 0x4, scoped, tag = 'scoped memory for bert_contrastive_forward.1']
    #allocation13 [shape = 'u8[8192]{0}', space=vmem, size = 0x2000, scoped, tag = 'output window, operand 0']
    #allocation14 [shape = 'u8[1024]{0}', space=vmem, size = 0x400, scoped, tag = 'output window, operand 1']
    #allocation15 [shape = 's32[2]{0}', space=sflag, size = 0x8, scoped, tag = 'scoped memory for bert_contrastive_forward.1']
    %28 = vsyncpa [#allocation3], 0
    %29 = vsyncpa [#allocation6], 0
    %30 = vsyncpa [#allocation12], 0
    %31 = vsyncpa [#allocation4], 0
    %s32 = scalar_lea.sflag [#allocation4], 1
    %33 = vsyncpa %s32, 0
    %34 = vsyncpa [#allocation15], 0
    %s35 = scalar_lea.sflag [#allocation15], 1
    %36 = vsyncpa %s35, 0
    loop: start=0, step=1, limit=6
    $region2: #{bert_contrastive_forward.1} parent=1 // loop_pre_header
      _
    $region3: #{bert_contrastive_forward.1} parent=1 // loop_header
      %s38 = sphi 0, %s42
      %p39 = scmp.ge.s32.totalorder %s38, 6
      %s45 = sphi 0, %s57
      %s46 = sphi 0, %s53
      %s47 = sphi 0, %s45
      %s48 = sphi 0, %s46
      %s49 = sphi 0, %s47
      %s50 = sphi 0, %s48
      %s60 = sphi 0, %s62
      %s63 = sphi 0, %s60
      %s64 = sphi 0, %s63
      %s80 = sphi 0, %s64
      %s86 = sphi 0, %s88
      %s89 = sphi 0, %s86
      %s90 = sphi 0, %s89
      %s106 = sphi 0, %s90
      %s110 = sphi 0, %s110
      %s112 = sphi 0, %s110
      %s113 = sphi 0, %s112
      %s127 = sphi 0, %s113
      %s131 = sphi 0, %s131
      %s133 = sphi 0, %s131
      %s134 = sphi 0, %s133
      %s148 = sphi 0, %s134
      %s152 = sphi 0, %s152
      %s154 = sphi 0, %s152
      %s155 = sphi 0, %s154
      %s169 = sphi 0, %s155
      %s173 = sphi 0, %s173
      %s175 = sphi 0, %s173
      %s176 = sphi 0, %s175
      %s190 = sphi 0, %s176
      %s194 = sphi 0, %s194
      %s196 = sphi 0, %s194
      %s197 = sphi 0, %s196
      %s211 = sphi 0, %s197
      %s217 = sphi 0, %s219
      %s220 = sphi 0, %s217
      %s221 = sphi 0, %s220
      %s237 = sphi 0, %s221
      %s243 = sphi 0, %s245
      %s246 = sphi 0, %s243
      %s247 = sphi 0, %s246
      %s263 = sphi 0, %s247
      %s269 = sphi 0, %s271
      %s272 = sphi 0, %s269
      %s273 = sphi 0, %s272
      %s289 = sphi 0, %s273
      %s295 = sphi 0, %s297
      %s298 = sphi 0, %s295
      %s299 = sphi 0, %s298
      %s315 = sphi 0, %s299
      %s321 = sphi 0, %s323
      %s324 = sphi 0, %s321
      %s325 = sphi 0, %s324
      %s341 = sphi 0, %s325
      %s347 = sphi 0, %s349
      %s350 = sphi 0, %s347
      %s351 = sphi 0, %s350
      %s367 = sphi 0, %s351
      %s373 = sphi 0, %s375
      %s376 = sphi 0, %s373
      %s377 = sphi 0, %s376
      %s393 = sphi 0, %s377
      %s399 = sphi 0, %s401
      %s402 = sphi 0, %s399
      %s403 = sphi 0, %s402
      %s419 = sphi 0, %s403
      %s425 = sphi 0, %s427
      %s428 = sphi 0, %s425
      %s429 = sphi 0, %s428
      %s445 = sphi 0, %s429
      %s451 = sphi 0, %s453
      %s454 = sphi 0, %s451
      %s455 = sphi 0, %s454
      %s471 = sphi 0, %s455
      %s477 = sphi 0, %s479
      %s480 = sphi 0, %s477
      %s481 = sphi 0, %s480
      %s497 = sphi 0, %s481
      %s503 = sphi 0, %s505
      %s506 = sphi 0, %s503
      %s507 = sphi 0, %s506
      %s523 = sphi 0, %s507
      %s527 = sphi 0, %s527
      %s529 = sphi 0, %s527
      %s530 = sphi 0, %s529
      %s544 = sphi 0, %s530
      %s548 = sphi 0, %s548
      %s550 = sphi 0, %s548
      %s551 = sphi 0, %s550
      %s565 = sphi 0, %s551
      %s571 = sphi 0, %s573
      %s574 = sphi 0, %s571
      %s575 = sphi 0, %s574
      %s591 = sphi 0, %s575
      %s597 = sphi 0, %s599
      %s600 = sphi 0, %s597
      %s601 = sphi 0, %s600
      %s617 = sphi 0, %s601
    $region4: #{bert_contrastive_forward.1} parent=1 // loop_header_branch
      %41 = sbr.rel (%p39) target = $region8
    $region5: #{bert_contrastive_forward.1} parent=1 // loop_body
      %s43 = ssub.s32 %s38, 1
      %s44 = ssub.s32 %s38, 2
      %s51 = sadd.s32 1, %s46
      %p52 = scmp.ge.s32.totalorder %s51, 2
      %s53 = scalar_select %p52, 0, %s51
      %s54 = sadd.s32 1, %s45
      %s55 = scalar_select %p52, %s54, %s45
      %p56 = scmp.ge.s32.totalorder %s55, 2
      %s57 = scalar_select %p56, 0, %s55
      %s58 = ssub.s32 %s45, %s57
      %p59 = scmp.eq.s32.totalorder %s58, 0
      %s61 = sadd.s32 %s60, 1
      %s62 = scalar_select %p59, %s60, %s61
      %p65 = pneg %p59
      %p66 = scmp.eq.s32.totalorder %s38, 3
      %p67 = por %p65, %p66
      %p68 = scmp.ne.s32.totalorder %s60, %s63
      %p69 = scmp.eq.s32.totalorder %s38, 0
      %p70 = por %p68, %p69
      %p71 = scmp.ne.s32.totalorder %s60, %s63
      %p72 = scmp.eq.s32.totalorder %s43, 3
      %p73 = por %p71, %p72
      %p74 = scmp.ne.s32.totalorder %s63, %s64
      %p75 = scmp.eq.s32.totalorder %s43, 0
      %p76 = por %p74, %p75
      %p77 = scmp.ne.s32.totalorder %s63, %s64
      %p78 = scmp.eq.s32.totalorder %s44, 3
      %p79 = por %p77, %p78
      %p81 = scmp.ne.s32.totalorder %s64, %s80
      %p82 = scmp.eq.s32.totalorder %s44, 0
      %p83 = por %p81, %p82
      %s84 = ssub.s32 %s45, %s57
      %p85 = scmp.eq.s32.totalorder %s84, 0
      %s87 = sadd.s32 %s86, 1
      %s88 = scalar_select %p85, %s86, %s87
      %p91 = pneg %p85
      %p92 = scmp.eq.s32.totalorder %s38, 3
      %p93 = por %p91, %p92
      %p94 = scmp.ne.s32.totalorder %s86, %s89
      %p95 = scmp.eq.s32.totalorder %s38, 0
      %p96 = por %p94, %p95
      %p97 = scmp.ne.s32.totalorder %s86, %s89
      %p98 = scmp.eq.s32.totalorder %s43, 3
      %p99 = por %p97, %p98
      %p100 = scmp.ne.s32.totalorder %s89, %s90
      %p101 = scmp.eq.s32.totalorder %s43, 0
      %p102 = por %p100, %p101
      %p103 = scmp.ne.s32.totalorder %s89, %s90
      %p104 = scmp.eq.s32.totalorder %s44, 3
      %p105 = por %p103, %p104
      %p107 = scmp.ne.s32.totalorder %s90, %s106
      %p108 = scmp.eq.s32.totalorder %s44, 0
      %p109 = por %p107, %p108
      %s111 = sadd.s32 %s110, 1
      %p114 = scmp.eq.s32.totalorder %s38, 3
      %p115 = scmp.ne.s32.totalorder %s110, %s112
      %p116 = scmp.eq.s32.totalorder %s38, 0
      %p117 = por %p115, %p116
      %p118 = scmp.ne.s32.totalorder %s110, %s112
      %p119 = scmp.eq.s32.totalorder %s43, 3
      %p120 = por %p118, %p119
      %p121 = scmp.ne.s32.totalorder %s112, %s113
      %p122 = scmp.eq.s32.totalorder %s43, 0
      %p123 = por %p121, %p122
      %p124 = scmp.ne.s32.totalorder %s112, %s113
      %p125 = scmp.eq.s32.totalorder %s44, 3
      %p126 = por %p124, %p125
      %p128 = scmp.ne.s32.totalorder %s113, %s127
      %p129 = scmp.eq.s32.totalorder %s44, 0
      %p130 = por %p128, %p129
      %s132 = sadd.s32 %s131, 1
      %p135 = scmp.eq.s32.totalorder %s38, 3
      %p136 = scmp.ne.s32.totalorder %s131, %s133
      %p137 = scmp.eq.s32.totalorder %s38, 0
      %p138 = por %p136, %p137
      %p139 = scmp.ne.s32.totalorder %s131, %s133
      %p140 = scmp.eq.s32.totalorder %s43, 3
      %p141 = por %p139, %p140
      %p142 = scmp.ne.s32.totalorder %s133, %s134
      %p143 = scmp.eq.s32.totalorder %s43, 0
      %p144 = por %p142, %p143
      %p145 = scmp.ne.s32.totalorder %s133, %s134
      %p146 = scmp.eq.s32.totalorder %s44, 3
      %p147 = por %p145, %p146
      %p149 = scmp.ne.s32.totalorder %s134, %s148
      %p150 = scmp.eq.s32.totalorder %s44, 0
      %p151 = por %p149, %p150
      %s153 = sadd.s32 %s152, 1
      %p156 = scmp.eq.s32.totalorder %s38, 3
      %p157 = scmp.ne.s32.totalorder %s152, %s154
      %p158 = scmp.eq.s32.totalorder %s38, 0
      %p159 = por %p157, %p158
      %p160 = scmp.ne.s32.totalorder %s152, %s154
      %p161 = scmp.eq.s32.totalorder %s43, 3
      %p162 = por %p160, %p161
      %p163 = scmp.ne.s32.totalorder %s154, %s155
      %p164 = scmp.eq.s32.totalorder %s43, 0
      %p165 = por %p163, %p164
      %p166 = scmp.ne.s32.totalorder %s154, %s155
      %p167 = scmp.eq.s32.totalorder %s44, 3
      %p168 = por %p166, %p167
      %p170 = scmp.ne.s32.totalorder %s155, %s169
      %p171 = scmp.eq.s32.totalorder %s44, 0
      %p172 = por %p170, %p171
      %s174 = sadd.s32 %s173, 1
      %p177 = scmp.eq.s32.totalorder %s38, 3
      %p178 = scmp.ne.s32.totalorder %s173, %s175
      %p179 = scmp.eq.s32.totalorder %s38, 0
      %p180 = por %p178, %p179
      %p181 = scmp.ne.s32.totalorder %s173, %s175
      %p182 = scmp.eq.s32.totalorder %s43, 3
      %p183 = por %p181, %p182
      %p184 = scmp.ne.s32.totalorder %s175, %s176
      %p185 = scmp.eq.s32.totalorder %s43, 0
      %p186 = por %p184, %p185
      %p187 = scmp.ne.s32.totalorder %s175, %s176
      %p188 = scmp.eq.s32.totalorder %s44, 3
      %p189 = por %p187, %p188
      %p191 = scmp.ne.s32.totalorder %s176, %s190
      %p192 = scmp.eq.s32.totalorder %s44, 0
      %p193 = por %p191, %p192
      %s195 = sadd.s32 %s194, 1
      %p198 = scmp.eq.s32.totalorder %s38, 3
      %p199 = scmp.ne.s32.totalorder %s194, %s196
      %p200 = scmp.eq.s32.totalorder %s38, 0
      %p201 = por %p199, %p200
      %p202 = scmp.ne.s32.totalorder %s194, %s196
      %p203 = scmp.eq.s32.totalorder %s43, 3
      %p204 = por %p202, %p203
      %p205 = scmp.ne.s32.totalorder %s196, %s197
      %p206 = scmp.eq.s32.totalorder %s43, 0
      %p207 = por %p205, %p206
      %p208 = scmp.ne.s32.totalorder %s196, %s197
      %p209 = scmp.eq.s32.totalorder %s44, 3
      %p210 = por %p208, %p209
      %p212 = scmp.ne.s32.totalorder %s197, %s211
      %p213 = scmp.eq.s32.totalorder %s44, 0
      %p214 = por %p212, %p213
      %s215 = ssub.s32 %s46, %s53
      %p216 = scmp.eq.s32.totalorder %s215, 0
      %s218 = sadd.s32 %s217, 1
      %s219 = scalar_select %p216, %s217, %s218
      %p222 = pneg %p216
      %p223 = scmp.eq.s32.totalorder %s38, 3
      %p224 = por %p222, %p223
      %p225 = scmp.ne.s32.totalorder %s217, %s220
      %p226 = scmp.eq.s32.totalorder %s38, 0
      %p227 = por %p225, %p226
      %p228 = scmp.ne.s32.totalorder %s217, %s220
      %p229 = scmp.eq.s32.totalorder %s43, 3
      %p230 = por %p228, %p229
      %p231 = scmp.ne.s32.totalorder %s220, %s221
      %p232 = scmp.eq.s32.totalorder %s43, 0
      %p233 = por %p231, %p232
      %p234 = scmp.ne.s32.totalorder %s220, %s221
      %p235 = scmp.eq.s32.totalorder %s44, 3
      %p236 = por %p234, %p235
      %p238 = scmp.ne.s32.totalorder %s221, %s237
      %p239 = scmp.eq.s32.totalorder %s44, 0
      %p240 = por %p238, %p239
      %s241 = ssub.s32 %s46, %s53
      %p242 = scmp.eq.s32.totalorder %s241, 0
      %s244 = sadd.s32 %s243, 1
      %s245 = scalar_select %p242, %s243, %s244
      %p248 = pneg %p242
      %p249 = scmp.eq.s32.totalorder %s38, 3
      %p250 = por %p248, %p249
      %p251 = scmp.ne.s32.totalorder %s243, %s246
      %p252 = scmp.eq.s32.totalorder %s38, 0
      %p253 = por %p251, %p252
      %p254 = scmp.ne.s32.totalorder %s243, %s246
      %p255 = scmp.eq.s32.totalorder %s43, 3
      %p256 = por %p254, %p255
      %p257 = scmp.ne.s32.totalorder %s246, %s247
      %p258 = scmp.eq.s32.totalorder %s43, 0
      %p259 = por %p257, %p258
      %p260 = scmp.ne.s32.totalorder %s246, %s247
      %p261 = scmp.eq.s32.totalorder %s44, 3
      %p262 = por %p260, %p261
      %p264 = scmp.ne.s32.totalorder %s247, %s263
      %p265 = scmp.eq.s32.totalorder %s44, 0
      %p266 = por %p264, %p265
      %s267 = ssub.s32 %s46, %s53
      %p268 = scmp.eq.s32.totalorder %s267, 0
      %s270 = sadd.s32 %s269, 1
      %s271 = scalar_select %p268, %s269, %s270
      %p274 = pneg %p268
      %p275 = scmp.eq.s32.totalorder %s38, 3
      %p276 = por %p274, %p275
      %p277 = scmp.ne.s32.totalorder %s269, %s272
      %p278 = scmp.eq.s32.totalorder %s38, 0
      %p279 = por %p277, %p278
      %p280 = scmp.ne.s32.totalorder %s269, %s272
      %p281 = scmp.eq.s32.totalorder %s43, 3
      %p282 = por %p280, %p281
      %p283 = scmp.ne.s32.totalorder %s272, %s273
      %p284 = scmp.eq.s32.totalorder %s43, 0
      %p285 = por %p283, %p284
      %p286 = scmp.ne.s32.totalorder %s272, %s273
      %p287 = scmp.eq.s32.totalorder %s44, 3
      %p288 = por %p286, %p287
      %p290 = scmp.ne.s32.totalorder %s273, %s289
      %p291 = scmp.eq.s32.totalorder %s44, 0
      %p292 = por %p290, %p291
      %s293 = ssub.s32 %s46, %s53
      %p294 = scmp.eq.s32.totalorder %s293, 0
      %s296 = sadd.s32 %s295, 1
      %s297 = scalar_select %p294, %s295, %s296
      %p300 = pneg %p294
      %p301 = scmp.eq.s32.totalorder %s38, 3
      %p302 = por %p300, %p301
      %p303 = scmp.ne.s32.totalorder %s295, %s298
      %p304 = scmp.eq.s32.totalorder %s38, 0
      %p305 = por %p303, %p304
      %p306 = scmp.ne.s32.totalorder %s295, %s298
      %p307 = scmp.eq.s32.totalorder %s43, 3
      %p308 = por %p306, %p307
      %p309 = scmp.ne.s32.totalorder %s298, %s299
      %p310 = scmp.eq.s32.totalorder %s43, 0
      %p311 = por %p309, %p310
      %p312 = scmp.ne.s32.totalorder %s298, %s299
      %p313 = scmp.eq.s32.totalorder %s44, 3
      %p314 = por %p312, %p313
      %p316 = scmp.ne.s32.totalorder %s299, %s315
      %p317 = scmp.eq.s32.totalorder %s44, 0
      %p318 = por %p316, %p317
      %s319 = ssub.s32 %s46, %s53
      %p320 = scmp.eq.s32.totalorder %s319, 0
      %s322 = sadd.s32 %s321, 1
      %s323 = scalar_select %p320, %s321, %s322
      %p326 = pneg %p320
      %p327 = scmp.eq.s32.totalorder %s38, 3
      %p328 = por %p326, %p327
      %p329 = scmp.ne.s32.totalorder %s321, %s324
      %p330 = scmp.eq.s32.totalorder %s38, 0
      %p331 = por %p329, %p330
      %p332 = scmp.ne.s32.totalorder %s321, %s324
      %p333 = scmp.eq.s32.totalorder %s43, 3
      %p334 = por %p332, %p333
      %p335 = scmp.ne.s32.totalorder %s324, %s325
      %p336 = scmp.eq.s32.totalorder %s43, 0
      %p337 = por %p335, %p336
      %p338 = scmp.ne.s32.totalorder %s324, %s325
      %p339 = scmp.eq.s32.totalorder %s44, 3
      %p340 = por %p338, %p339
      %p342 = scmp.ne.s32.totalorder %s325, %s341
      %p343 = scmp.eq.s32.totalorder %s44, 0
      %p344 = por %p342, %p343
      %s345 = ssub.s32 %s46, %s53
      %p346 = scmp.eq.s32.totalorder %s345, 0
      %s348 = sadd.s32 %s347, 1
      %s349 = scalar_select %p346, %s347, %s348
      %p352 = pneg %p346
      %p353 = scmp.eq.s32.totalorder %s38, 3
      %p354 = por %p352, %p353
      %p355 = scmp.ne.s32.totalorder %s347, %s350
      %p356 = scmp.eq.s32.totalorder %s38, 0
      %p357 = por %p355, %p356
      %p358 = scmp.ne.s32.totalorder %s347, %s350
      %p359 = scmp.eq.s32.totalorder %s43, 3
      %p360 = por %p358, %p359
      %p361 = scmp.ne.s32.totalorder %s350, %s351
      %p362 = scmp.eq.s32.totalorder %s43, 0
      %p363 = por %p361, %p362
      %p364 = scmp.ne.s32.totalorder %s350, %s351
      %p365 = scmp.eq.s32.totalorder %s44, 3
      %p366 = por %p364, %p365
      %p368 = scmp.ne.s32.totalorder %s351, %s367
      %p369 = scmp.eq.s32.totalorder %s44, 0
      %p370 = por %p368, %p369
      %s371 = ssub.s32 %s46, %s53
      %p372 = scmp.eq.s32.totalorder %s371, 0
      %s374 = sadd.s32 %s373, 1
      %s375 = scalar_select %p372, %s373, %s374
      %p378 = pneg %p372
      %p379 = scmp.eq.s32.totalorder %s38, 3
      %p380 = por %p378, %p379
      %p381 = scmp.ne.s32.totalorder %s373, %s376
      %p382 = scmp.eq.s32.totalorder %s38, 0
      %p383 = por %p381, %p382
      %p384 = scmp.ne.s32.totalorder %s373, %s376
      %p385 = scmp.eq.s32.totalorder %s43, 3
      %p386 = por %p384, %p385
      %p387 = scmp.ne.s32.totalorder %s376, %s377
      %p388 = scmp.eq.s32.totalorder %s43, 0
      %p389 = por %p387, %p388
      %p390 = scmp.ne.s32.totalorder %s376, %s377
      %p391 = scmp.eq.s32.totalorder %s44, 3
      %p392 = por %p390, %p391
      %p394 = scmp.ne.s32.totalorder %s377, %s393
      %p395 = scmp.eq.s32.totalorder %s44, 0
      %p396 = por %p394, %p395
      %s397 = ssub.s32 %s46, %s53
      %p398 = scmp.eq.s32.totalorder %s397, 0
      %s400 = sadd.s32 %s399, 1
      %s401 = scalar_select %p398, %s399, %s400
      %p404 = pneg %p398
      %p405 = scmp.eq.s32.totalorder %s38, 3
      %p406 = por %p404, %p405
      %p407 = scmp.ne.s32.totalorder %s399, %s402
      %p408 = scmp.eq.s32.totalorder %s38, 0
      %p409 = por %p407, %p408
      %p410 = scmp.ne.s32.totalorder %s399, %s402
      %p411 = scmp.eq.s32.totalorder %s43, 3
      %p412 = por %p410, %p411
      %p413 = scmp.ne.s32.totalorder %s402, %s403
      %p414 = scmp.eq.s32.totalorder %s43, 0
      %p415 = por %p413, %p414
      %p416 = scmp.ne.s32.totalorder %s402, %s403
      %p417 = scmp.eq.s32.totalorder %s44, 3
      %p418 = por %p416, %p417
      %p420 = scmp.ne.s32.totalorder %s403, %s419
      %p421 = scmp.eq.s32.totalorder %s44, 0
      %p422 = por %p420, %p421
      %s423 = ssub.s32 %s46, %s53
      %p424 = scmp.eq.s32.totalorder %s423, 0
      %s426 = sadd.s32 %s425, 1
      %s427 = scalar_select %p424, %s425, %s426
      %p430 = pneg %p424
      %p431 = scmp.eq.s32.totalorder %s38, 3
      %p432 = por %p430, %p431
      %p433 = scmp.ne.s32.totalorder %s425, %s428
      %p434 = scmp.eq.s32.totalorder %s38, 0
      %p435 = por %p433, %p434
      %p436 = scmp.ne.s32.totalorder %s425, %s428
      %p437 = scmp.eq.s32.totalorder %s43, 3
      %p438 = por %p436, %p437
      %p439 = scmp.ne.s32.totalorder %s428, %s429
      %p440 = scmp.eq.s32.totalorder %s43, 0
      %p441 = por %p439, %p440
      %p442 = scmp.ne.s32.totalorder %s428, %s429
      %p443 = scmp.eq.s32.totalorder %s44, 3
      %p444 = por %p442, %p443
      %p446 = scmp.ne.s32.totalorder %s429, %s445
      %p447 = scmp.eq.s32.totalorder %s44, 0
      %p448 = por %p446, %p447
      %s449 = ssub.s32 %s46, %s53
      %p450 = scmp.eq.s32.totalorder %s449, 0
      %s452 = sadd.s32 %s451, 1
      %s453 = scalar_select %p450, %s451, %s452
      %p456 = pneg %p450
      %p457 = scmp.eq.s32.totalorder %s38, 3
      %p458 = por %p456, %p457
      %p459 = scmp.ne.s32.totalorder %s451, %s454
      %p460 = scmp.eq.s32.totalorder %s38, 0
      %p461 = por %p459, %p460
      %p462 = scmp.ne.s32.totalorder %s451, %s454
      %p463 = scmp.eq.s32.totalorder %s43, 3
      %p464 = por %p462, %p463
      %p465 = scmp.ne.s32.totalorder %s454, %s455
      %p466 = scmp.eq.s32.totalorder %s43, 0
      %p467 = por %p465, %p466
      %p468 = scmp.ne.s32.totalorder %s454, %s455
      %p469 = scmp.eq.s32.totalorder %s44, 3
      %p470 = por %p468, %p469
      %p472 = scmp.ne.s32.totalorder %s455, %s471
      %p473 = scmp.eq.s32.totalorder %s44, 0
      %p474 = por %p472, %p473
      %s475 = ssub.s32 %s46, %s53
      %p476 = scmp.eq.s32.totalorder %s475, 0
      %s478 = sadd.s32 %s477, 1
      %s479 = scalar_select %p476, %s477, %s478
      %p482 = pneg %p476
      %p483 = scmp.eq.s32.totalorder %s38, 3
      %p484 = por %p482, %p483
      %p485 = scmp.ne.s32.totalorder %s477, %s480
      %p486 = scmp.eq.s32.totalorder %s38, 0
      %p487 = por %p485, %p486
      %p488 = scmp.ne.s32.totalorder %s477, %s480
      %p489 = scmp.eq.s32.totalorder %s43, 3
      %p490 = por %p488, %p489
      %p491 = scmp.ne.s32.totalorder %s480, %s481
      %p492 = scmp.eq.s32.totalorder %s43, 0
      %p493 = por %p491, %p492
      %p494 = scmp.ne.s32.totalorder %s480, %s481
      %p495 = scmp.eq.s32.totalorder %s44, 3
      %p496 = por %p494, %p495
      %p498 = scmp.ne.s32.totalorder %s481, %s497
      %p499 = scmp.eq.s32.totalorder %s44, 0
      %p500 = por %p498, %p499
      %s501 = ssub.s32 %s46, %s53
      %p502 = scmp.eq.s32.totalorder %s501, 0
      %s504 = sadd.s32 %s503, 1
      %s505 = scalar_select %p502, %s503, %s504
      %p508 = pneg %p502
      %p509 = scmp.eq.s32.totalorder %s38, 3
      %p510 = por %p508, %p509
      %p511 = scmp.ne.s32.totalorder %s503, %s506
      %p512 = scmp.eq.s32.totalorder %s38, 0
      %p513 = por %p511, %p512
      %p514 = scmp.ne.s32.totalorder %s503, %s506
      %p515 = scmp.eq.s32.totalorder %s43, 3
      %p516 = por %p514, %p515
      %p517 = scmp.ne.s32.totalorder %s506, %s507
      %p518 = scmp.eq.s32.totalorder %s43, 0
      %p519 = por %p517, %p518
      %p520 = scmp.ne.s32.totalorder %s506, %s507
      %p521 = scmp.eq.s32.totalorder %s44, 3
      %p522 = por %p520, %p521
      %p524 = scmp.ne.s32.totalorder %s507, %s523
      %p525 = scmp.eq.s32.totalorder %s44, 0
      %p526 = por %p524, %p525
      %s528 = sadd.s32 %s527, 1
      %p531 = scmp.eq.s32.totalorder %s38, 3
      %p532 = scmp.ne.s32.totalorder %s527, %s529
      %p533 = scmp.eq.s32.totalorder %s38, 0
      %p534 = por %p532, %p533
      %p535 = scmp.ne.s32.totalorder %s527, %s529
      %p536 = scmp.eq.s32.totalorder %s43, 3
      %p537 = por %p535, %p536
      %p538 = scmp.ne.s32.totalorder %s529, %s530
      %p539 = scmp.eq.s32.totalorder %s43, 0
      %p540 = por %p538, %p539
      %p541 = scmp.ne.s32.totalorder %s529, %s530
      %p542 = scmp.eq.s32.totalorder %s44, 3
      %p543 = por %p541, %p542
      %p545 = scmp.ne.s32.totalorder %s530, %s544
      %p546 = scmp.eq.s32.totalorder %s44, 0
      %p547 = por %p545, %p546
      %s549 = sadd.s32 %s548, 1
      %p552 = scmp.eq.s32.totalorder %s38, 3
      %p553 = scmp.ne.s32.totalorder %s548, %s550
      %p554 = scmp.eq.s32.totalorder %s38, 0
      %p555 = por %p553, %p554
      %p556 = scmp.ne.s32.totalorder %s548, %s550
      %p557 = scmp.eq.s32.totalorder %s43, 3
      %p558 = por %p556, %p557
      %p559 = scmp.ne.s32.totalorder %s550, %s551
      %p560 = scmp.eq.s32.totalorder %s43, 0
      %p561 = por %p559, %p560
      %p562 = scmp.ne.s32.totalorder %s550, %s551
      %p563 = scmp.eq.s32.totalorder %s44, 3
      %p564 = por %p562, %p563
      %p566 = scmp.ne.s32.totalorder %s551, %s565
      %p567 = scmp.eq.s32.totalorder %s44, 0
      %p568 = por %p566, %p567
      %s569 = ssub.s32 %s45, %s57
      %p570 = scmp.eq.s32.totalorder %s569, 0
      %s572 = sadd.s32 %s571, 1
      %s573 = scalar_select %p570, %s571, %s572
      %p576 = pneg %p570
      %p577 = scmp.eq.s32.totalorder %s38, 3
      %p578 = por %p576, %p577
      %p579 = scmp.ne.s32.totalorder %s571, %s574
      %p580 = scmp.eq.s32.totalorder %s38, 0
      %p581 = por %p579, %p580
      %p582 = scmp.ne.s32.totalorder %s571, %s574
      %p583 = scmp.eq.s32.totalorder %s43, 3
      %p584 = por %p582, %p583
      %p585 = scmp.ne.s32.totalorder %s574, %s575
      %p586 = scmp.eq.s32.totalorder %s43, 0
      %p587 = por %p585, %p586
      %p588 = scmp.ne.s32.totalorder %s574, %s575
      %p589 = scmp.eq.s32.totalorder %s44, 3
      %p590 = por %p588, %p589
      %p592 = scmp.ne.s32.totalorder %s575, %s591
      %p593 = scmp.eq.s32.totalorder %s44, 0
      %p594 = por %p592, %p593
      %s595 = ssub.s32 %s45, %s57
      %p596 = scmp.eq.s32.totalorder %s595, 0
      %s598 = sadd.s32 %s597, 1
      %s599 = scalar_select %p596, %s597, %s598
      %p602 = pneg %p596
      %p603 = scmp.eq.s32.totalorder %s38, 3
      %p604 = por %p602, %p603
      %p605 = scmp.ne.s32.totalorder %s597, %s600
      %p606 = scmp.eq.s32.totalorder %s38, 0
      %p607 = por %p605, %p606
      %p608 = scmp.ne.s32.totalorder %s597, %s600
      %p609 = scmp.eq.s32.totalorder %s43, 3
      %p610 = por %p608, %p609
      %p611 = scmp.ne.s32.totalorder %s600, %s601
      %p612 = scmp.eq.s32.totalorder %s43, 0
      %p613 = por %p611, %p612
      %p614 = scmp.ne.s32.totalorder %s600, %s601
      %p615 = scmp.eq.s32.totalorder %s44, 3
      %p616 = por %p614, %p615
      %p618 = scmp.ne.s32.totalorder %s601, %s617
      %p619 = scmp.eq.s32.totalorder %s44, 0
      %p620 = por %p618, %p619
      %p621 = scmp.le.s32.totalorder 1, %s38
      %p622 = scmp.lt.s32.totalorder %s38, 5
      %p623 = pnand %p621, %p622
      %p624 = pneg %p623
      // Predicated region
      $region9: #{bert_contrastive_forward.1} parent=5 // pred_check
        _
      $region10: #{bert_contrastive_forward.1} parent=5 // pred_check_branch
        %626 = sbr.rel (%p623) target = $region12
      $region11: #{bert_contrastive_forward.1} parent=5 // pred_region
        %s627 = ssub.s32 %s38, 1
        // Predicated region
        $region13: #{bert_contrastive_forward.1} parent=11 // pred_check
          %p628 = pneg %p123
        $region14: #{bert_contrastive_forward.1} parent=11 // pred_check_branch
          %630 = sbr.rel (%p628) target = $region16
        $region15: #{bert_contrastive_forward.1} parent=11 // pred_region
          _
        $region16: #{bert_contrastive_forward.1} parent=11 // pred_fallthru
          _
        // Predicated region
        $region17: #{bert_contrastive_forward.1} parent=11 // pred_check
          %p631 = pneg %p144
        $region18: #{bert_contrastive_forward.1} parent=11 // pred_check_branch
          %633 = sbr.rel (%p631) target = $region20
        $region19: #{bert_contrastive_forward.1} parent=11 // pred_region
          _
        $region20: #{bert_contrastive_forward.1} parent=11 // pred_fallthru
          _
        // Predicated region
        $region21: #{bert_contrastive_forward.1} parent=11 // pred_check
          %p634 = pneg %p165
        $region22: #{bert_contrastive_forward.1} parent=11 // pred_check_branch
          %636 = sbr.rel (%p634) target = $region24
        $region23: #{bert_contrastive_forward.1} parent=11 // pred_region
          _
        $region24: #{bert_contrastive_forward.1} parent=11 // pred_fallthru
          _
        // Predicated region
        $region25: #{bert_contrastive_forward.1} parent=11 // pred_check
          %p637 = pneg %p186
        $region26: #{bert_contrastive_forward.1} parent=11 // pred_check_branch
          %639 = sbr.rel (%p637) target = $region28
        $region27: #{bert_contrastive_forward.1} parent=11 // pred_region
          %641 = vsyncadd [#allocation3], 0
          %s643 = sshll.u32 %s5, 4
          %s644 = int_to_ptr.hbm [resolvable:$true] %s643
          %s645 = sshll.u32 [#allocation2], 4
          %s646 = int_to_ptr.vmem [resolvable:$true] %s645
          %648 = dma.hbm_to_vmem [thread:$0]  %s644, 16, %s646, [#allocation3]
        $region28: #{bert_contrastive_forward.1} parent=11 // pred_fallthru
          _
        // Predicated region
        $region29: #{bert_contrastive_forward.1} parent=11 // pred_check
          %p649 = pneg %p207
        $region30: #{bert_contrastive_forward.1} parent=11 // pred_check_branch
          %651 = sbr.rel (%p649) target = $region32
        $region31: #{bert_contrastive_forward.1} parent=11 // pred_region
          %653 = vsyncadd [#allocation6], 0
          %s655 = sshll.u32 %s6, 4
          %s656 = int_to_ptr.hbm [resolvable:$true] %s655
          %s657 = sshll.u32 [#allocation5], 4
          %s658 = int_to_ptr.vmem [resolvable:$true] %s657
          %660 = dma.hbm_to_vmem [thread:$0]  %s656, 16, %s658, [#allocation6]
        $region32: #{bert_contrastive_forward.1} parent=11 // pred_fallthru
          _
        // Predicated region
        $region33: #{bert_contrastive_forward.1} parent=11 // pred_check
          %p661 = pneg %p540
        $region34: #{bert_contrastive_forward.1} parent=11 // pred_check_branch
          %663 = sbr.rel (%p661) target = $region36
        $region35: #{bert_contrastive_forward.1} parent=11 // pred_region
          %665 = vsyncadd [#allocation6], 0
          %s666 = sshll.u32 %s19, 4
          %s667 = int_to_ptr.hbm [resolvable:$true] %s666
          %s668 = sshll.u32 [#allocation10], 4
          %s669 = int_to_ptr.vmem [resolvable:$true] %s668
          %674 = dma.hbm_to_vmem [thread:$0]  %s667, 256, %s669, [#allocation6], 64, 64, 4
        $region36: #{bert_contrastive_forward.1} parent=11 // pred_fallthru
          _
        // Predicated region
        $region37: #{bert_contrastive_forward.1} parent=11 // pred_check
          %p675 = pneg %p561
        $region38: #{bert_contrastive_forward.1} parent=11 // pred_check_branch
          %677 = sbr.rel (%p675) target = $region40
        $region39: #{bert_contrastive_forward.1} parent=11 // pred_region
          %679 = vsyncadd [#allocation12], 0
          %s681 = sshll.u32 %s20, 4
          %s682 = int_to_ptr.hbm [resolvable:$true] %s681
          %s683 = sshll.u32 [#allocation11], 4
          %s684 = int_to_ptr.vmem [resolvable:$true] %s683
          %686 = dma.hbm_to_vmem [thread:$0]  %s682, 16, %s684, [#allocation12]
        $region40: #{bert_contrastive_forward.1} parent=11 // pred_fallthru
          _
      $region12: #{bert_contrastive_forward.1} parent=5 // pred_fallthru
        _
      %p687 = scmp.lt.s32.totalorder %s38, 4
      // Predicated region
      $region41: #{bert_contrastive_forward.1} parent=5 // pred_check
        %p688 = pneg %p687
      $region42: #{bert_contrastive_forward.1} parent=5 // pred_check_branch
        %690 = sbr.rel (%p688) target = $region44
      $region43: #{bert_contrastive_forward.1} parent=5 // pred_region
        // Predicated region
        $region45: #{bert_contrastive_forward.1} parent=43 // pred_check
          %p691 = pneg %p70
        $region46: #{bert_contrastive_forward.1} parent=43 // pred_check_branch
          %693 = sbr.rel (%p691) target = $region48
        $region47: #{bert_contrastive_forward.1} parent=43 // pred_region
          %p694 = scmp.lt.s32.totalorder %s45, 1
          %s695 = scalar_select %p694, %s45, 1
          %s696 = smul.addr %s695, 8
          %s697 = scalar_lea.vmem %s0, %s696
        $region48: #{bert_contrastive_forward.1} parent=43 // pred_fallthru
          _
        // Predicated region
        $region49: #{bert_contrastive_forward.1} parent=43 // pred_check
          %p698 = pneg %p96
        $region50: #{bert_contrastive_forward.1} parent=43 // pred_check_branch
          %700 = sbr.rel (%p698) target = $region52
        $region51: #{bert_contrastive_forward.1} parent=43 // pred_region
          %p701 = scmp.lt.s32.totalorder %s45, 1
          %s702 = scalar_select %p701, %s45, 1
          %s703 = scalar_lea.vmem %s1, %s702
        $region52: #{bert_contrastive_forward.1} parent=43 // pred_fallthru
          _
        // Predicated region
        $region53: #{bert_contrastive_forward.1} parent=43 // pred_check
          %p704 = pneg %p227
        $region54: #{bert_contrastive_forward.1} parent=43 // pred_check_branch
          %706 = sbr.rel (%p704) target = $region56
        $region55: #{bert_contrastive_forward.1} parent=43 // pred_region
          %p707 = scmp.lt.s32.totalorder %s46, 1
          %s708 = scalar_select %p707, %s46, 1
          %s709 = smul.addr %s708, 4
          %s710 = smul.addr %s709, 4
          %s711 = scalar_lea.vmem %s7, %s710
        $region56: #{bert_contrastive_forward.1} parent=43 // pred_fallthru
          _
        // Predicated region
        $region57: #{bert_contrastive_forward.1} parent=43 // pred_check
          %p712 = pneg %p253
        $region58: #{bert_contrastive_forward.1} parent=43 // pred_check_branch
          %714 = sbr.rel (%p712) target = $region60
        $region59: #{bert_contrastive_forward.1} parent=43 // pred_region
          %p715 = scmp.lt.s32.totalorder %s46, 1
          %s716 = scalar_select %p715, %s46, 1
          %s717 = scalar_lea.vmem %s8, %s716
        $region60: #{bert_contrastive_forward.1} parent=43 // pred_fallthru
          _
        // Predicated region
        $region61: #{bert_contrastive_forward.1} parent=43 // pred_check
          %p718 = pneg %p279
        $region62: #{bert_contrastive_forward.1} parent=43 // pred_check_branch
          %720 = sbr.rel (%p718) target = $region64
        $region63: #{bert_contrastive_forward.1} parent=43 // pred_region
          %p721 = scmp.lt.s32.totalorder %s46, 1
          %s722 = scalar_select %p721, %s46, 1
          %s723 = smul.addr %s722, 4
          %s724 = smul.addr %s723, 4
          %s725 = scalar_lea.vmem %s9, %s724
        $region64: #{bert_contrastive_forward.1} parent=43 // pred_fallthru
          _
        // Predicated region
        $region65: #{bert_contrastive_forward.1} parent=43 // pred_check
          %p726 = pneg %p305
        $region66: #{bert_contrastive_forward.1} parent=43 // pred_check_branch
          %728 = sbr.rel (%p726) target = $region68
        $region67: #{bert_contrastive_forward.1} parent=43 // pred_region
          %p729 = scmp.lt.s32.totalorder %s46, 1
          %s730 = scalar_select %p729, %s46, 1
          %s731 = scalar_lea.vmem %s10, %s730
        $region68: #{bert_contrastive_forward.1} parent=43 // pred_fallthru
          _
        // Predicated region
        $region69: #{bert_contrastive_forward.1} parent=43 // pred_check
          %p732 = pneg %p331
        $region70: #{bert_contrastive_forward.1} parent=43 // pred_check_branch
          %734 = sbr.rel (%p732) target = $region72
        $region71: #{bert_contrastive_forward.1} parent=43 // pred_region
          %p735 = scmp.lt.s32.totalorder %s46, 1
          %s736 = scalar_select %p735, %s46, 1
          %s737 = scalar_lea.vmem %s11, %s736
        $region72: #{bert_contrastive_forward.1} parent=43 // pred_fallthru
          _
        // Predicated region
        $region73: #{bert_contrastive_forward.1} parent=43 // pred_check
          %p738 = pneg %p357
        $region74: #{bert_contrastive_forward.1} parent=43 // pred_check_branch
          %740 = sbr.rel (%p738) target = $region76
        $region75: #{bert_contrastive_forward.1} parent=43 // pred_region
          %p741 = scmp.lt.s32.totalorder %s46, 1
          %s742 = scalar_select %p741, %s46, 1
          %s743 = scalar_lea.vmem %s12, %s742
        $region76: #{bert_contrastive_forward.1} parent=43 // pred_fallthru
          _
        // Predicated region
        $region77: #{bert_contrastive_forward.1} parent=43 // pred_check
          %p744 = pneg %p383
        $region78: #{bert_contrastive_forward.1} parent=43 // pred_check_branch
          %746 = sbr.rel (%p744) target = $region80
        $region79: #{bert_contrastive_forward.1} parent=43 // pred_region
          %p747 = scmp.lt.s32.totalorder %s46, 1
          %s748 = scalar_select %p747, %s46, 1
          %s749 = smul.addr %s748, 4
          %s750 = smul.addr %s749, 4
          %s751 = scalar_lea.vmem %s13, %s750
        $region80: #{bert_contrastive_forward.1} parent=43 // pred_fallthru
          _
        // Predicated region
        $region81: #{bert_contrastive_forward.1} parent=43 // pred_check
          %p752 = pneg %p409
        $region82: #{bert_contrastive_forward.1} parent=43 // pred_check_branch
          %754 = sbr.rel (%p752) target = $region84
        $region83: #{bert_contrastive_forward.1} parent=43 // pred_region
          %p755 = scmp.lt.s32.totalorder %s46, 1
          %s756 = scalar_select %p755, %s46, 1
          %s757 = scalar_lea.vmem %s14, %s756
        $region84: #{bert_contrastive_forward.1} parent=43 // pred_fallthru
          _
        // Predicated region
        $region85: #{bert_contrastive_forward.1} parent=43 // pred_check
          %p758 = pneg %p435
        $region86: #{bert_contrastive_forward.1} parent=43 // pred_check_branch
          %760 = sbr.rel (%p758) target = $region88
        $region87: #{bert_contrastive_forward.1} parent=43 // pred_region
          %p761 = scmp.lt.s32.totalorder %s46, 1
          %s762 = scalar_select %p761, %s46, 1
          %s763 = smul.addr %s762, 8
          %s764 = smul.addr %s763, 4
          %s765 = scalar_lea.vmem %s15, %s764
        $region88: #{bert_contrastive_forward.1} parent=43 // pred_fallthru
          _
        // Predicated region
        $region89: #{bert_contrastive_forward.1} parent=43 // pred_check
          %p766 = pneg %p461
        $region90: #{bert_contrastive_forward.1} parent=43 // pred_check_branch
          %768 = sbr.rel (%p766) target = $region92
        $region91: #{bert_contrastive_forward.1} parent=43 // pred_region
          %s769 = sand.u32 %s38, 1
          %s770 = scalar_lea.sflag [#allocation3], %s769
          %s771 = sand.u32 %s451, 1
          %s772 = scalar_lea.vmem [#allocation7], %s771
          %774 = vsyncadd %s770, 0
          %s775 = scalar_lea.hbm %s16, %s46
          %s777 = sshll.u32 %s775, 4
          %s778 = int_to_ptr.hbm [resolvable:$true] %s777
          %s779 = sshll.u32 %s772, 4
          %s780 = int_to_ptr.vmem [resolvable:$true] %s779
          %782 = dma.hbm_to_vmem [thread:$0]  %s778, 16, %s780, %s770
        $region92: #{bert_contrastive_forward.1} parent=43 // pred_fallthru
          _
        // Predicated region
        $region93: #{bert_contrastive_forward.1} parent=43 // pred_check
          %p783 = pneg %p487
        $region94: #{bert_contrastive_forward.1} parent=43 // pred_check_branch
          %785 = sbr.rel (%p783) target = $region96
        $region95: #{bert_contrastive_forward.1} parent=43 // pred_region
          %s786 = sand.u32 %s38, 1
          %s787 = scalar_lea.sflag [#allocation3], %s786
          %s788 = sand.u32 %s477, 1
          %s789 = scalar_lea.vmem [#allocation8], %s788
          %791 = vsyncadd %s787, 0
          %s792 = scalar_lea.hbm %s17, %s46
          %s794 = sshll.u32 %s792, 4
          %s795 = int_to_ptr.hbm [resolvable:$true] %s794
          %s796 = sshll.u32 %s789, 4
          %s797 = int_to_ptr.vmem [resolvable:$true] %s796
          %799 = dma.hbm_to_vmem [thread:$0]  %s795, 16, %s797, %s787
        $region96: #{bert_contrastive_forward.1} parent=43 // pred_fallthru
          _
        // Predicated region
        $region97: #{bert_contrastive_forward.1} parent=43 // pred_check
          %p800 = pneg %p513
        $region98: #{bert_contrastive_forward.1} parent=43 // pred_check_branch
          %802 = sbr.rel (%p800) target = $region100
        $region99: #{bert_contrastive_forward.1} parent=43 // pred_region
          %s803 = sand.u32 %s38, 1
          %s804 = scalar_lea.sflag [#allocation3], %s803
          %s805 = sand.u32 %s503, 1
          %s806 = scalar_lea.vmem [#allocation9], %s805
          %808 = vsyncadd %s804, 0
          %s809 = scalar_lea.hbm %s18, %s46
          %s811 = sshll.u32 %s809, 4
          %s812 = int_to_ptr.hbm [resolvable:$true] %s811
          %s813 = sshll.u32 %s806, 4
          %s814 = int_to_ptr.vmem [resolvable:$true] %s813
          %816 = dma.hbm_to_vmem [thread:$0]  %s812, 16, %s814, %s804
        $region100: #{bert_contrastive_forward.1} parent=43 // pred_fallthru
          _
      $region44: #{bert_contrastive_forward.1} parent=5 // pred_fallthru
        _
      %p817 = scmp.le.s32.totalorder 1, %s38
      %p818 = scmp.lt.s32.totalorder %s38, 5
      %p819 = pnand %p817, %p818
      %p820 = pneg %p819
      // Predicated region
      $region101: #{bert_contrastive_forward.1} parent=5 // pred_check
        _
      $region102: #{bert_contrastive_forward.1} parent=5 // pred_check_branch
        %822 = sbr.rel (%p819) target = $region104
      $region103: #{bert_contrastive_forward.1} parent=5 // pred_region
        %s823 = ssub.s32 %s38, 1
        // Predicated region
        $region105: #{bert_contrastive_forward.1} parent=103 // pred_check
          %p824 = pneg %p186
        $region106: #{bert_contrastive_forward.1} parent=103 // pred_check_branch
          %826 = sbr.rel (%p824) target = $region108
        $region107: #{bert_contrastive_forward.1} parent=103 // pred_region
          %828 = dma.done [#allocation3], 16
        $region108: #{bert_contrastive_forward.1} parent=103 // pred_fallthru
          _
        // Predicated region
        $region109: #{bert_contrastive_forward.1} parent=103 // pred_check
          %p829 = pneg %p207
        $region110: #{bert_contrastive_forward.1} parent=103 // pred_check_branch
          %831 = sbr.rel (%p829) target = $region112
        $region111: #{bert_contrastive_forward.1} parent=103 // pred_region
          %833 = dma.done [#allocation6], 16
        $region112: #{bert_contrastive_forward.1} parent=103 // pred_fallthru
          _
        %s834 = sand.u32 %s43, 1
        %s835 = scalar_lea.sflag [#allocation3], %s834
        %s836 = sand.u32 %s454, 1
        %s837 = scalar_lea.vmem [#allocation7], %s836
        // Predicated region
        $region113: #{bert_contrastive_forward.1} parent=103 // pred_check
          %p838 = pneg %p467
        $region114: #{bert_contrastive_forward.1} parent=103 // pred_check_branch
          %840 = sbr.rel (%p838) target = $region116
        $region115: #{bert_contrastive_forward.1} parent=103 // pred_region
          %842 = dma.done %s835, 16
        $region116: #{bert_contrastive_forward.1} parent=103 // pred_fallthru
          _
        %s843 = sand.u32 %s43, 1
        %s844 = scalar_lea.sflag [#allocation3], %s843
        %s845 = sand.u32 %s480, 1
        %s846 = scalar_lea.vmem [#allocation8], %s845
        // Predicated region
        $region117: #{bert_contrastive_forward.1} parent=103 // pred_check
          %p847 = pneg %p493
        $region118: #{bert_contrastive_forward.1} parent=103 // pred_check_branch
          %849 = sbr.rel (%p847) target = $region120
        $region119: #{bert_contrastive_forward.1} parent=103 // pred_region
          %851 = dma.done %s844, 16
        $region120: #{bert_contrastive_forward.1} parent=103 // pred_fallthru
          _
        %s852 = sand.u32 %s43, 1
        %s853 = scalar_lea.sflag [#allocation3], %s852
        %s854 = sand.u32 %s506, 1
        %s855 = scalar_lea.vmem [#allocation9], %s854
        // Predicated region
        $region121: #{bert_contrastive_forward.1} parent=103 // pred_check
          %p856 = pneg %p519
        $region122: #{bert_contrastive_forward.1} parent=103 // pred_check_branch
          %858 = sbr.rel (%p856) target = $region124
        $region123: #{bert_contrastive_forward.1} parent=103 // pred_region
          %860 = dma.done %s853, 16
        $region124: #{bert_contrastive_forward.1} parent=103 // pred_fallthru
          _
        // Predicated region
        $region125: #{bert_contrastive_forward.1} parent=103 // pred_check
          %p861 = pneg %p540
        $region126: #{bert_contrastive_forward.1} parent=103 // pred_check_branch
          %863 = sbr.rel (%p861) target = $region128
        $region127: #{bert_contrastive_forward.1} parent=103 // pred_region
          %865 = dma.done [#allocation6], 256
        $region128: #{bert_contrastive_forward.1} parent=103 // pred_fallthru
          _
        // Predicated region
        $region129: #{bert_contrastive_forward.1} parent=103 // pred_check
          %p866 = pneg %p561
        $region130: #{bert_contrastive_forward.1} parent=103 // pred_check_branch
          %868 = sbr.rel (%p866) target = $region132
        $region131: #{bert_contrastive_forward.1} parent=103 // pred_region
          %870 = dma.done [#allocation12], 16
        $region132: #{bert_contrastive_forward.1} parent=103 // pred_fallthru
          _
        %p871 = scmp.lt.s32.totalorder %s47, 1
        %s872 = scalar_select %p871, %s47, 1
        %s873 = smul.addr %s872, 8
        %s874 = scalar_lea.vmem %s0, %s873
        %p875 = pneg %p76
        %p876 = pneg %p73
        %p877 = scmp.lt.s32.totalorder %s47, 1
        %s878 = scalar_select %p877, %s47, 1
        %s879 = scalar_lea.vmem %s1, %s878
        %p880 = pneg %p102
        %p881 = pneg %p99
        %p882 = pneg %p123
        %p883 = pneg %p120
        %p884 = pneg %p144
        %p885 = pneg %p141
        %p886 = pneg %p165
        %p887 = pneg %p162
        %p888 = pneg %p186
        %p889 = pneg %p183
        %p890 = pneg %p207
        %p891 = pneg %p204
        %p892 = scmp.lt.s32.totalorder %s48, 1
        %s893 = scalar_select %p892, %s48, 1
        %s894 = smul.addr %s893, 4
        %s895 = smul.addr %s894, 4
        %s896 = scalar_lea.vmem %s7, %s895
        %p897 = pneg %p233
        %p898 = pneg %p230
        %p899 = scmp.lt.s32.totalorder %s48, 1
        %s900 = scalar_select %p899, %s48, 1
        %s901 = scalar_lea.vmem %s8, %s900
        %p902 = pneg %p259
        %p903 = pneg %p256
        %p904 = scmp.lt.s32.totalorder %s48, 1
        %s905 = scalar_select %p904, %s48, 1
        %s906 = smul.addr %s905, 4
        %s907 = smul.addr %s906, 4
        %s908 = scalar_lea.vmem %s9, %s907
        %p909 = pneg %p285
        %p910 = pneg %p282
        %p911 = scmp.lt.s32.totalorder %s48, 1
        %s912 = scalar_select %p911, %s48, 1
        %s913 = scalar_lea.vmem %s10, %s912
        %p914 = pneg %p311
        %p915 = pneg %p308
        %p916 = scmp.lt.s32.totalorder %s48, 1
        %s917 = scalar_select %p916, %s48, 1
        %s918 = scalar_lea.vmem %s11, %s917
        %p919 = pneg %p337
        %p920 = pneg %p334
        %p921 = scmp.lt.s32.totalorder %s48, 1
        %s922 = scalar_select %p921, %s48, 1
        %s923 = scalar_lea.vmem %s12, %s922
        %p924 = pneg %p363
        %p925 = pneg %p360
        %p926 = scmp.lt.s32.totalorder %s48, 1
        %s927 = scalar_select %p926, %s48, 1
        %s928 = smul.addr %s927, 4
        %s929 = smul.addr %s928, 4
        %s930 = scalar_lea.vmem %s13, %s929
        %p931 = pneg %p389
        %p932 = pneg %p386
        %p933 = scmp.lt.s32.totalorder %s48, 1
        %s934 = scalar_select %p933, %s48, 1
        %s935 = scalar_lea.vmem %s14, %s934
        %p936 = pneg %p415
        %p937 = pneg %p412
        %p938 = scmp.lt.s32.totalorder %s48, 1
        %s939 = scalar_select %p938, %s48, 1
        %s940 = smul.addr %s939, 8
        %s941 = smul.addr %s940, 4
        %s942 = scalar_lea.vmem %s15, %s941
        %p943 = pneg %p441
        %p944 = pneg %p438
        %s945 = sand.u32 %s43, 1
        %s946 = scalar_lea.sflag [#allocation3], %s945
        %s947 = sand.u32 %s454, 1
        %s948 = scalar_lea.vmem [#allocation7], %s947
        %p949 = pneg %p467
        %p950 = pneg %p464
        %s951 = sand.u32 %s43, 1
        %s952 = scalar_lea.sflag [#allocation3], %s951
        %s953 = sand.u32 %s480, 1
        %s954 = scalar_lea.vmem [#allocation8], %s953
        %p955 = pneg %p493
        %p956 = pneg %p490
        %s957 = sand.u32 %s43, 1
        %s958 = scalar_lea.sflag [#allocation3], %s957
        %s959 = sand.u32 %s506, 1
        %s960 = scalar_lea.vmem [#allocation9], %s959
        %p961 = pneg %p519
        %p962 = pneg %p516
        %p963 = pneg %p540
        %p964 = pneg %p537
        %p965 = pneg %p561
        %p966 = pneg %p558
        %p967 = pneg %p587
        %p968 = pneg %p584
        %s969 = sand.u32 %s574, 1
        %s970 = scalar_lea.sflag [#allocation4], %s969
        %s971 = sand.u32 %s574, 1
        %s972 = smul.addr %s971, 8
        %s973 = scalar_lea.vmem [#allocation13], %s972
        %p974 = pneg %p613
        %p975 = pneg %p610
        %s976 = sand.u32 %s600, 1
        %s977 = scalar_lea.sflag [#allocation15], %s976
        %s978 = sand.u32 %s600, 1
        %s979 = scalar_lea.vmem [#allocation14], %s978
        %p980 = scmp.lt.s32.totalorder %s47, 1
        %s981 = scalar_select %p980, %s47, 1
        %s982 = smul.addr %s981, 8
        %s983 = scalar_lea.vmem %s0, %s982
        %p984 = scmp.lt.s32.totalorder %s47, 1
        %s985 = scalar_select %p984, %s47, 1
        %s986 = scalar_lea.vmem %s1, %s985
        %p987 = scmp.lt.s32.totalorder %s48, 1
        %s988 = scalar_select %p987, %s48, 1
        %s989 = smul.addr %s988, 4
        %s990 = smul.addr %s989, 4
        %s991 = scalar_lea.vmem %s7, %s990
        %p992 = scmp.lt.s32.totalorder %s48, 1
        %s993 = scalar_select %p992, %s48, 1
        %s994 = scalar_lea.vmem %s8, %s993
        %p995 = scmp.lt.s32.totalorder %s48, 1
        %s996 = scalar_select %p995, %s48, 1
        %s997 = smul.addr %s996, 4
        %s998 = smul.addr %s997, 4
        %s999 = scalar_lea.vmem %s9, %s998
        %p1000 = scmp.lt.s32.totalorder %s48, 1
        %s1001 = scalar_select %p1000, %s48, 1
        %s1002 = scalar_lea.vmem %s10, %s1001
        %p1003 = scmp.lt.s32.totalorder %s48, 1
        %s1004 = scalar_select %p1003, %s48, 1
        %s1005 = scalar_lea.vmem %s11, %s1004
        %p1006 = scmp.lt.s32.totalorder %s48, 1
        %s1007 = scalar_select %p1006, %s48, 1
        %s1008 = scalar_lea.vmem %s12, %s1007
        %p1009 = scmp.lt.s32.totalorder %s48, 1
        %s1010 = scalar_select %p1009, %s48, 1
        %s1011 = smul.addr %s1010, 4
        %s1012 = smul.addr %s1011, 4
        %s1013 = scalar_lea.vmem %s13, %s1012
        %p1014 = scmp.lt.s32.totalorder %s48, 1
        %s1015 = scalar_select %p1014, %s48, 1
        %s1016 = scalar_lea.vmem %s14, %s1015
        %p1017 = scmp.lt.s32.totalorder %s48, 1
        %s1018 = scalar_select %p1017, %s48, 1
        %s1019 = smul.addr %s1018, 8
        %s1020 = smul.addr %s1019, 4
        %s1021 = scalar_lea.vmem %s15, %s1020
        %p1023 = scmp.eq.s32.totalorder %s48, 0
        // Predicated region
        $region133: #{bert_contrastive_forward.1} parent=103 // pred_check
          %p1024 = pneg %p1023
        $region134: #{bert_contrastive_forward.1} parent=103 // pred_check_branch
          %1026 = sbr.rel (%p1024) target = $region136
        $region135: #{bert_contrastive_forward.1} parent=103 // pred_region
          %v1027 = vld [vmem:[%s983] sm:$0xff]
          %v1028 = vlaneseq
          %v1029 = vand.u32 %v1028, 127
          %1030 = vset.pattern.permute.xlu0 0
          %1031 = vperm.xlu0 %1030, %v1027
          %v1032 = vpop.permute.xlu0 %1031
          %vm1033 = vcmp.eq.s32.totalorder %v1029, %v1032
          %v1034 = vsel %vm1033, 1, 0
          %v1035 = vcvt.s32.f32 %v1034
          %v1036 = vpack.c.bf16 %v1035, %v1035
          %v1037 = vld [vmem:[%s2] sm:$0xf]
          %v1038 = vld [vmem:[%s2 + $0x4] sm:$0xf]
          %v1039 = vld [vmem:[%s2 + $0x8] sm:$0xf]
          %v1040 = vld [vmem:[%s2 + $0xc] sm:$0xf]
          %v1041 = vld [vmem:[%s2 + $0x10] sm:$0xf]
          %v1042 = vld [vmem:[%s2 + $0x14] sm:$0xf]
          %v1043 = vld [vmem:[%s2 + $0x18] sm:$0xf]
          %v1044 = vld [vmem:[%s2 + $0x1c] sm:$0xf]
          %v1045 = vld [vmem:[%s3] sm:$0xff]
          %v1054 = vunpack.c.l.b16 %v1037
          %v1055 = vunpack.c.l.b16 %v1038
          %v1056 = vunpack.c.l.b16 %v1039
          %v1057 = vunpack.c.l.b16 %v1040
          %v1058 = vunpack.c.l.b16 %v1041
          %v1059 = vunpack.c.l.b16 %v1042
          %v1060 = vunpack.c.l.b16 %v1043
          %v1061 = vunpack.c.l.b16 %v1044
          %v1062 = vpack.c.b16 %v1055, %v1054
          %v1063 = vpack.c.b16 %v1057, %v1056
          %v1064 = vpack.c.b16 %v1059, %v1058
          %v1065 = vpack.c.b16 %v1061, %v1060
          %vm1070 = vcmask 523264
          %v1072 = vsel %vm1070, %v1036, 0
          %1074 = vmatpush.bf16.msra.mxu0 0
          %1075 = vmatpush.bf16.msra.mxu0 0
          %1076 = vmatpush.bf16.msra.mxu0 0
          %1077 = vmatpush.bf16.msra.mxu0 0
          %1078 = vmatpush.bf16.msra.mxu0 %v1065
          %1079 = vmatpush.bf16.msra.mxu0 %v1064
          %1080 = vmatpush.bf16.msra.mxu0 %v1063
          %1081 = vmatpush.bf16.msra.mxu0 %v1062
          %1082 = vmatmul.bf16.gmra.mxu0 %v1072
          %v1083 = vpop.f32.mrf.mxu0
          %v1084 = vadd.f32 %v1045, %v1083
          %v1085 = vpop.f32.mrf.mxu0
          %1086 = vdwg.mxu0
          %v1087 = vld [vmem:[%s4] sm:$0x1]
          %v1088 = vperm.slane %v1087, 0
          %v1089 = vadd.f32 %v1084, %v1088
          %v1090 = vld [vmem:[#allocation2] sm:$0x1]
          %v1091 = vld [vmem:[#allocation5] sm:$0x1]
          %vm1092 = vcmask 261120
          %v1093 = vsel %vm1092, %v1089, 0.0
          %1094 = vadd.xlane.f32.xlu0 %v1093
          %v1095 = vpop.xlane.xlu0 %1094
          %v1096 = vrcp.pop 32.0
          %v1097 = vmul.f32 32.0, %v1096
          %v1098 = vsub.f32 1.0, %v1097
          %v1099 = vmul.f32 %v1096, %v1098
          %v1100 = vadd.f32 %v1096, %v1099
          %vm1101 = vweird.f32 %v1096
          %v1102 = vsel %vm1101, %v1096, %v1100
          %v1103 = vmul.f32 %v1095, %v1102
          %v1104 = vsub.f32 %v1089, %v1103
          %v1105 = vmul.f32 %v1104, %v1104
          %v1106 = vsel %vm1092, %v1105, 0.0
          %1107 = vadd.xlane.f32.xlu0 %v1106
          %v1108 = vpop.xlane.xlu0 %1107
          %v1109 = vmul.f32 %v1108, %v1102
          %v1110 = vadd.f32 %v1109, 1e-12
          %v1111 = vrsqrt.pop %v1110
          %v1112 = vmul.f32 %v1111, %v1110
          %v1113 = vmul.f32 %v1112, %v1111
          %v1114 = vmul.f32 0.5, %v1113
          %v1115 = vsub.f32 1.5, %v1114
          %v1116 = vmul.f32 %v1111, %v1115
          %vm1117 = vweird.f32 %v1110
          %vm1118 = vweird.f32 %v1111
          %vm1119 = vmor %vm1117, %vm1118
          %v1120 = vsel %vm1119, %v1111, %v1116
          %v1121 = vmul.f32 %v1104, %v1120
          %v1123 = vperm.slane %v1090, 0
          %v1125 = vmul.f32 %v1121, %v1123
          %v1127 = vperm.slane %v1091, 0
          %v1129 = vadd.f32 %v1125, %v1127
          %1130 = vst.msk [vmem:[%s973] sm:$0xff] %vm1092, %v1129
        $region136: #{bert_contrastive_forward.1} parent=103 // pred_fallthru
          _
        %v1131 = vld [vmem:[%s973] sm:$0xff]
        %v1132 = vpack.c.bf16 %v1131, %v1131
        %v1133 = vld [vmem:[%s991] sm:$0xf]
        %v1134 = vld [vmem:[%s991 + $0x4] sm:$0xf]
        %v1135 = vld [vmem:[%s991 + $0x8] sm:$0xf]
        %v1136 = vld [vmem:[%s991 + $0xc] sm:$0xf]
        %v1137 = vld [vmem:[%s994] sm:$0x1]
        %v1139 = vperm.slane %v1137, 0
        %v1145 = vunpack.c.l.b16 %v1133
        %v1146 = vunpack.c.l.b16 %v1134
        %v1147 = vunpack.c.l.b16 %v1135
        %v1148 = vunpack.c.l.b16 %v1136
        %v1149 = vpack.c.b16 %v1146, %v1145
        %v1150 = vpack.c.b16 %v1148, %v1147
        %vm1153 = vcmask 261120
        %v1155 = vsel %vm1153, %v1132, 0
        %1157 = vmatpush.bf16.msra.mxu0 0
        %1158 = vmatpush.bf16.msra.mxu0 0
        %1159 = vmatpush.bf16.msra.mxu0 0
        %1160 = vmatpush.bf16.msra.mxu0 0
        %1161 = vmatpush.bf16.msra.mxu0 0
        %1162 = vmatpush.bf16.msra.mxu0 0
        %1163 = vmatpush.bf16.msra.mxu0 %v1150
        %1164 = vmatpush.bf16.msra.mxu0 %v1149
        %1165 = vmatmul.bf16.gmra.mxu0 %v1155
        %v1166 = vpop.f32.mrf.mxu0
        %v1167 = vadd.f32 %v1139, %v1166
        %v1168 = vpop.f32.mrf.mxu0
        %1169 = vdwg.mxu0
        %v1170 = vld [vmem:[%s986] sm:$0x1]
        %v1171 = vsub.f32 1.0, %v1170
        %v1172 = vmul.f32 %v1171, -10000.0
        %1174 = vrot.lane.b32.xlu0 %v1167, 120
        %v1175 = vpop.permute.xlu0 %1174
        %1177 = vrot.lane.b32.xlu0 %v1167, 112
        %v1178 = vpop.permute.xlu0 %1177
        %1180 = vrot.lane.b32.xlu0 %v1167, 104
        %v1181 = vpop.permute.xlu0 %1180
        %v1183 = vpack.c.bf16 %v1167, %v1167
        %v1184 = vpack.c.bf16 %v1175, %v1175
        %v1185 = vpack.c.bf16 %v1178, %v1178
        %v1186 = vpack.c.bf16 %v1181, %v1181
        %v1188 = vperm.slane %v1172, 0
        %v1191 = vunpack.c.l.b16 %v1183
        %v1192 = vpack.c.b16 %v1191, %v1191
        %1193 = vrot.lane.b32.xlu0 %v1192, 96
        %v1194 = vpop.permute.xlu0 %1193
        %vm1195 = vcmask 64512
        %v1197 = vsel %vm1195, %v1183, 0
        %v1200 = vsel %vm1195, %v1194, 0
        %1202 = vmatpush.bf16.xpose.msra.mxu0 0
        %1203 = vmatpush.bf16.xpose.msra.mxu0 0
        %1204 = vmatpush.bf16.xpose.msra.mxu0 0
        %1205 = vmatpush.bf16.xpose.msra.mxu0 0
        %1206 = vmatpush.bf16.xpose.msra.mxu0 0
        %1207 = vmatpush.bf16.xpose.msra.mxu0 0
        %1208 = vmatpush.bf16.xpose.msra.mxu0 0
        %1209 = vmatpush.bf16.xpose.msra.mxu0 %v1200
        %1210 = vmatmul.bf16.gmra.mxu0 %v1197
        %v1211 = vpop.f32.mrf.mxu0
        %v1212 = vadd.f32 %v1188, %v1211
        %v1213 = vpop.f32.mrf.mxu0
        %1214 = vdwg.mxu0
        %v1216 = vunpack.c.l.b16 %v1184
        %v1217 = vpack.c.b16 %v1216, %v1216
        %1218 = vrot.lane.b32.xlu0 %v1217, 96
        %v1219 = vpop.permute.xlu0 %1218
        %v1221 = vsel %vm1195, %v1184, 0
        %v1224 = vsel %vm1195, %v1219, 0
        %1226 = vmatpush.bf16.xpose.msra.mxu0 0
        %1227 = vmatpush.bf16.xpose.msra.mxu0 0
        %1228 = vmatpush.bf16.xpose.msra.mxu0 0
        %1229 = vmatpush.bf16.xpose.msra.mxu0 0
        %1230 = vmatpush.bf16.xpose.msra.mxu0 0
        %1231 = vmatpush.bf16.xpose.msra.mxu0 0
        %1232 = vmatpush.bf16.xpose.msra.mxu0 0
        %1233 = vmatpush.bf16.xpose.msra.mxu0 %v1224
        %1234 = vmatmul.bf16.gmra.mxu0 %v1221
        %v1235 = vpop.f32.mrf.mxu0
        %v1236 = vadd.f32 %v1188, %v1235
        %v1237 = vpop.f32.mrf.mxu0
        %1238 = vdwg.mxu0
        %v1240 = vunpack.c.l.b16 %v1185
        %v1241 = vpack.c.b16 %v1240, %v1240
        %1242 = vrot.lane.b32.xlu0 %v1241, 96
        %v1243 = vpop.permute.xlu0 %1242
        %v1245 = vsel %vm1195, %v1185, 0
        %v1248 = vsel %vm1195, %v1243, 0
        %1250 = vmatpush.bf16.xpose.msra.mxu0 0
        %1251 = vmatpush.bf16.xpose.msra.mxu0 0
        %1252 = vmatpush.bf16.xpose.msra.mxu0 0
        %1253 = vmatpush.bf16.xpose.msra.mxu0 0
        %1254 = vmatpush.bf16.xpose.msra.mxu0 0
        %1255 = vmatpush.bf16.xpose.msra.mxu0 0
        %1256 = vmatpush.bf16.xpose.msra.mxu0 0
        %1257 = vmatpush.bf16.xpose.msra.mxu0 %v1248
        %1258 = vmatmul.bf16.gmra.mxu0 %v1245
        %v1259 = vpop.f32.mrf.mxu0
        %v1260 = vadd.f32 %v1188, %v1259
        %v1261 = vpop.f32.mrf.mxu0
        %1262 = vdwg.mxu0
        %v1264 = vunpack.c.l.b16 %v1186
        %v1265 = vpack.c.b16 %v1264, %v1264
        %1266 = vrot.lane.b32.xlu0 %v1265, 96
        %v1267 = vpop.permute.xlu0 %1266
        %v1269 = vsel %vm1195, %v1186, 0
        %v1272 = vsel %vm1195, %v1267, 0
        %1274 = vmatpush.bf16.xpose.msra.mxu0 0
        %1275 = vmatpush.bf16.xpose.msra.mxu0 0
        %1276 = vmatpush.bf16.xpose.msra.mxu0 0
        %1277 = vmatpush.bf16.xpose.msra.mxu0 0
        %1278 = vmatpush.bf16.xpose.msra.mxu0 0
        %1279 = vmatpush.bf16.xpose.msra.mxu0 0
        %1280 = vmatpush.bf16.xpose.msra.mxu0 0
        %1281 = vmatpush.bf16.xpose.msra.mxu0 %v1272
        %1282 = vmatmul.bf16.gmra.mxu0 %v1269
        %v1283 = vpop.f32.mrf.mxu0
        %v1284 = vadd.f32 %v1188, %v1283
        %v1285 = vpop.f32.mrf.mxu0
        %1286 = vdwg.mxu0
        %v1287 = vsel %vm1195, %v1212, -inf
        %1288 = vmax.xlane.f32.xlu0 %v1287
        %v1289 = vpop.xlane.xlu0 %1288
        %v1290 = vsel %vm1195, %v1236, -inf
        %1291 = vmax.xlane.f32.xlu0 %v1290
        %v1292 = vpop.xlane.xlu0 %1291
        %v1293 = vsel %vm1195, %v1260, -inf
        %1294 = vmax.xlane.f32.xlu0 %v1293
        %v1295 = vpop.xlane.xlu0 %1294
        %v1296 = vsel %vm1195, %v1284, -inf
        %1297 = vmax.xlane.f32.xlu0 %v1296
        %v1298 = vpop.xlane.xlu0 %1297
        %v1299 = vsub.f32 %v1212, %v1289
        %v1300 = vsub.f32 %v1236, %v1292
        %v1301 = vsub.f32 %v1260, %v1295
        %v1302 = vsub.f32 %v1284, %v1298
        %v1303 = vmul.f32 %v1299, 1.442695
        %v1304 = vpow.pop %v1303
        %v1305 = vmul.f32 %v1300, 1.442695
        %v1306 = vpow.pop %v1305
        %v1307 = vmul.f32 %v1301, 1.442695
        %v1308 = vpow.pop %v1307
        %v1309 = vmul.f32 %v1302, 1.442695
        %v1310 = vpow.pop %v1309
        %v1311 = vsel %vm1195, %v1304, 0.0
        %1312 = vadd.xlane.f32.xlu0 %v1311
        %v1313 = vpop.xlane.xlu0 %1312
        %v1314 = vsel %vm1195, %v1306, 0.0
        %1315 = vadd.xlane.f32.xlu0 %v1314
        %v1316 = vpop.xlane.xlu0 %1315
        %v1317 = vsel %vm1195, %v1308, 0.0
        %1318 = vadd.xlane.f32.xlu0 %v1317
        %v1319 = vpop.xlane.xlu0 %1318
        %v1320 = vsel %vm1195, %v1310, 0.0
        %1321 = vadd.xlane.f32.xlu0 %v1320
        %v1322 = vpop.xlane.xlu0 %1321
        %v1323 = vrcp.pop %v1313
        %v1324 = vrcp.pop %v1316
        %v1325 = vrcp.pop %v1319
        %v1326 = vrcp.pop %v1322
        %v1327 = vmul.f32 %v1304, %v1323
        %v1328 = vmul.f32 %v1306, %v1324
        %v1329 = vmul.f32 %v1308, %v1325
        %v1330 = vmul.f32 %v1310, %v1326
        %v1331 = vpack.c.bf16 %v1327, %v1327
        %v1332 = vpack.c.bf16 %v1328, %v1328
        %v1333 = vpack.c.bf16 %v1329, %v1329
        %v1334 = vpack.c.bf16 %v1330, %v1330
        %1335 = vrot.lane.b32.xlu0 %v1192, 64
        %v1336 = vpop.permute.xlu0 %1335
        %v1338 = vsel %vm1195, %v1331, 0
        %vm1340 = vcmask 1043456
        %v1342 = vsel %vm1340, %v1336, 0
        %1344 = vmatpush.bf16.msra.mxu0 0
        %1345 = vmatpush.bf16.msra.mxu0 0
        %1346 = vmatpush.bf16.msra.mxu0 0
        %1347 = vmatpush.bf16.msra.mxu0 0
        %1348 = vmatpush.bf16.msra.mxu0 0
        %1349 = vmatpush.bf16.msra.mxu0 0
        %1350 = vmatpush.bf16.msra.mxu0 0
        %1351 = vmatpush.bf16.msra.mxu0 %v1342
        %1352 = vmatmul.bf16.gmra.mxu0 %v1338
        %v1353 = vpop.f32.mrf.mxu0
        %v1354 = vadd.f32 0.0, %v1353
        %v1355 = vpop.f32.mrf.mxu0
        %1356 = vdwg.mxu0
        %1357 = vrot.lane.b32.xlu0 %v1217, 64
        %v1358 = vpop.permute.xlu0 %1357
        %v1360 = vsel %vm1195, %v1332, 0
        %v1363 = vsel %vm1340, %v1358, 0
        %1365 = vmatpush.bf16.msra.mxu0 0
        %1366 = vmatpush.bf16.msra.mxu0 0
        %1367 = vmatpush.bf16.msra.mxu0 0
        %1368 = vmatpush.bf16.msra.mxu0 0
        %1369 = vmatpush.bf16.msra.mxu0 0
        %1370 = vmatpush.bf16.msra.mxu0 0
        %1371 = vmatpush.bf16.msra.mxu0 0
        %1372 = vmatpush.bf16.msra.mxu0 %v1363
        %1373 = vmatmul.bf16.gmra.mxu0 %v1360
        %v1374 = vpop.f32.mrf.mxu0
        %v1375 = vadd.f32 0.0, %v1374
        %v1376 = vpop.f32.mrf.mxu0
        %1377 = vdwg.mxu0
        %1378 = vrot.lane.b32.xlu0 %v1241, 64
        %v1379 = vpop.permute.xlu0 %1378
        %v1381 = vsel %vm1195, %v1333, 0
        %v1384 = vsel %vm1340, %v1379, 0
        %1386 = vmatpush.bf16.msra.mxu0 0
        %1387 = vmatpush.bf16.msra.mxu0 0
        %1388 = vmatpush.bf16.msra.mxu0 0
        %1389 = vmatpush.bf16.msra.mxu0 0
        %1390 = vmatpush.bf16.msra.mxu0 0
        %1391 = vmatpush.bf16.msra.mxu0 0
        %1392 = vmatpush.bf16.msra.mxu0 0
        %1393 = vmatpush.bf16.msra.mxu0 %v1384
        %1394 = vmatmul.bf16.gmra.mxu0 %v1381
        %v1395 = vpop.f32.mrf.mxu0
        %v1396 = vadd.f32 0.0, %v1395
        %v1397 = vpop.f32.mrf.mxu0
        %1398 = vdwg.mxu0
        %1399 = vrot.lane.b32.xlu0 %v1265, 64
        %v1400 = vpop.permute.xlu0 %1399
        %v1402 = vsel %vm1195, %v1334, 0
        %v1405 = vsel %vm1340, %v1400, 0
        %1407 = vmatpush.bf16.msra.mxu0 0
        %1408 = vmatpush.bf16.msra.mxu0 0
        %1409 = vmatpush.bf16.msra.mxu0 0
        %1410 = vmatpush.bf16.msra.mxu0 0
        %1411 = vmatpush.bf16.msra.mxu0 0
        %1412 = vmatpush.bf16.msra.mxu0 0
        %1413 = vmatpush.bf16.msra.mxu0 0
        %1414 = vmatpush.bf16.msra.mxu0 %v1405
        %1415 = vmatmul.bf16.gmra.mxu0 %v1402
        %v1416 = vpop.f32.mrf.mxu0
        %v1417 = vadd.f32 0.0, %v1416
        %v1418 = vpop.f32.mrf.mxu0
        %1419 = vdwg.mxu0
        %1421 = vrot.lane.b32.xlu0 %v1375, 8
        %v1422 = vpop.permute.xlu0 %1421
        %1425 = vrot.lane.b32.xlu0 %v1396, 16
        %v1426 = vpop.permute.xlu0 %1425
        %1429 = vrot.lane.b32.xlu0 %v1417, 24
        %v1430 = vpop.permute.xlu0 %1429
        %v1432 = vsel %vm1195, %v1354, %v1422
        %vm1433 = vcmask 130048
        %v1434 = vsel %vm1433, %v1432, %v1426
        %vm1435 = vcmask 195584
        %v1436 = vsel %vm1435, %v1434, %v1430
        %v1437 = vpack.c.bf16 %v1436, %v1436
        %v1438 = vld [vmem:[%s999] sm:$0xf]
        %v1439 = vld [vmem:[%s999 + $0x4] sm:$0xf]
        %v1440 = vld [vmem:[%s999 + $0x8] sm:$0xf]
        %v1441 = vld [vmem:[%s999 + $0xc] sm:$0xf]
        %v1442 = vld [vmem:[%s1002] sm:$0x1]
        %v1444 = vperm.slane %v1442, 0
        %v1450 = vunpack.c.l.b16 %v1438
        %v1451 = vunpack.c.l.b16 %v1439
        %v1452 = vunpack.c.l.b16 %v1440
        %v1453 = vunpack.c.l.b16 %v1441
        %v1454 = vpack.c.b16 %v1451, %v1450
        %v1455 = vpack.c.b16 %v1453, %v1452
        %v1459 = vsel %vm1153, %v1437, 0
        %1461 = vmatpush.bf16.msra.mxu0 0
        %1462 = vmatpush.bf16.msra.mxu0 0
        %1463 = vmatpush.bf16.msra.mxu0 0
        %1464 = vmatpush.bf16.msra.mxu0 0
        %1465 = vmatpush.bf16.msra.mxu0 0
        %1466 = vmatpush.bf16.msra.mxu0 0
        %1467 = vmatpush.bf16.msra.mxu0 %v1455
        %1468 = vmatpush.bf16.msra.mxu0 %v1454
        %1469 = vmatmul.bf16.gmra.mxu0 %v1459
        %v1470 = vpop.f32.mrf.mxu0
        %v1471 = vadd.f32 %v1444, %v1470
        %v1472 = vpop.f32.mrf.mxu0
        %1473 = vdwg.mxu0
        %v1474 = vadd.f32 %v1471, %v1131
        %v1475 = vld [vmem:[%s1005] sm:$0x1]
        %v1476 = vld [vmem:[%s1008] sm:$0x1]
        %v1477 = vsel %vm1153, %v1474, 0.0
        %1478 = vadd.xlane.f32.xlu0 %v1477
        %v1479 = vpop.xlane.xlu0 %1478
        %v1480 = vrcp.pop 32.0
        %v1481 = vmul.f32 32.0, %v1480
        %v1482 = vsub.f32 1.0, %v1481
        %v1483 = vmul.f32 %v1480, %v1482
        %v1484 = vadd.f32 %v1480, %v1483
        %vm1485 = vweird.f32 %v1480
        %v1486 = vsel %vm1485, %v1480, %v1484
        %v1487 = vmul.f32 %v1479, %v1486
        %v1488 = vsub.f32 %v1474, %v1487
        %v1489 = vmul.f32 %v1488, %v1488
        %v1490 = vsel %vm1153, %v1489, 0.0
        %1491 = vadd.xlane.f32.xlu0 %v1490
        %v1492 = vpop.xlane.xlu0 %1491
        %v1493 = vmul.f32 %v1492, %v1486
        %v1494 = vadd.f32 %v1493, 1e-12
        %v1495 = vrsqrt.pop %v1494
        %v1496 = vmul.f32 %v1495, %v1494
        %v1497 = vmul.f32 %v1496, %v1495
        %v1498 = vmul.f32 0.5, %v1497
        %v1499 = vsub.f32 1.5, %v1498
        %v1500 = vmul.f32 %v1495, %v1499
        %vm1501 = vweird.f32 %v1494
        %vm1502 = vweird.f32 %v1495
        %vm1503 = vmor %vm1501, %vm1502
        %v1504 = vsel %vm1503, %v1495, %v1500
        %v1505 = vmul.f32 %v1488, %v1504
        %v1507 = vperm.slane %v1475, 0
        %v1509 = vmul.f32 %v1505, %v1507
        %v1511 = vperm.slane %v1476, 0
        %v1513 = vadd.f32 %v1509, %v1511
        %v1514 = vpack.c.bf16 %v1513, %v1513
        %v1515 = vld [vmem:[%s1013] sm:$0xf]
        %v1516 = vld [vmem:[%s1013 + $0x4] sm:$0xf]
        %v1517 = vld [vmem:[%s1013 + $0x8] sm:$0xf]
        %v1518 = vld [vmem:[%s1013 + $0xc] sm:$0xf]
        %v1519 = vld [vmem:[%s1016] sm:$0x1]
        %v1521 = vperm.slane %v1519, 0
        %v1527 = vunpack.c.l.b16 %v1515
        %v1528 = vunpack.c.l.b16 %v1516
        %v1529 = vunpack.c.l.b16 %v1517
        %v1530 = vunpack.c.l.b16 %v1518
        %v1531 = vpack.c.b16 %v1528, %v1527
        %v1532 = vpack.c.b16 %v1530, %v1529
        %v1536 = vsel %vm1153, %v1514, 0
        %1538 = vmatpush.bf16.msra.mxu0 0
        %1539 = vmatpush.bf16.msra.mxu0 0
        %1540 = vmatpush.bf16.msra.mxu0 0
        %1541 = vmatpush.bf16.msra.mxu0 0
        %1542 = vmatpush.bf16.msra.mxu0 0
        %1543 = vmatpush.bf16.msra.mxu0 0
        %1544 = vmatpush.bf16.msra.mxu0 %v1532
        %1545 = vmatpush.bf16.msra.mxu0 %v1531
        %1546 = vmatmul.bf16.gmra.mxu0 %v1536
        %v1547 = vpop.f32.mrf.mxu0
        %v1548 = vadd.f32 %v1521, %v1547
        %v1549 = vpop.f32.mrf.mxu0
        %1550 = vdwg.mxu0
        %v1551 = vmul.f32 %v1548, 0.5
        %v1552 = vmul.f32 %v1548, 0.70710677
        %v1553 = vmul.f32 %v1552, %v1552
        %v1554 = vmin.f32 16.0, %v1553
        %v1555 = vmul.f32 %v1554, 2.1237322e-06
        %v1556 = vadd.f32 %v1555, 0.00028619796
        %v1557 = vmul.f32 %v1554, %v1556
        %v1558 = vadd.f32 %v1557, 0.0036580483
        %v1559 = vmul.f32 %v1554, %v1558
        %v1560 = vadd.f32 %v1559, 0.05243302
        %v1561 = vmul.f32 %v1554, %v1560
        %v1562 = vadd.f32 %v1561, 0.18741608
        %v1563 = vmul.f32 %v1554, %v1562
        %v1564 = vadd.f32 %v1563, 1.1283791
        %v1565 = vmul.f32 %v1552, %v1564
        %v1566 = vmul.f32 %v1554, 3.8918573e-05
        %v1567 = vadd.f32 %v1566, 0.001143296
        %v1568 = vmul.f32 %v1554, %v1567
        %v1569 = vadd.f32 %v1568, 0.014752088
        %v1570 = vmul.f32 %v1554, %v1569
        %v1571 = vadd.f32 %v1570, 0.112945676
        %v1572 = vmul.f32 %v1554, %v1571
        %v1573 = vadd.f32 %v1572, 0.4994258
        %v1574 = vmul.f32 %v1554, %v1573
        %v1575 = vadd.f32 %v1574, 1.0
        %v1576 = vrcp.pop %v1575
        %v1577 = vmul.f32 %v1575, %v1576
        %v1578 = vsub.f32 1.0, %v1577
        %v1579 = vmul.f32 %v1576, %v1578
        %v1580 = vadd.f32 %v1576, %v1579
        %vm1581 = vweird.f32 %v1575
        %vm1582 = vweird.f32 %v1576
        %vm1583 = vmor %vm1581, %vm1582
        %v1584 = vsel %vm1583, %v1576, %v1580
        %v1585 = vand.u32 2147483647, %v1575
        %vm1586 = vcmp.eq.f32.partialorder %v1585, 8.507059e+37
        %v1587 = vand.u32 %v1575, 2147483648
        %v1588 = vor.u32 1.1754944e-38, %v1587
        %v1589 = vsel %vm1586, %v1588, %v1584
        %v1590 = vmul.f32 %v1565, %v1589
        %v1591 = vmin.f32 %v1590, 1.0
        %v1592 = vmax.f32 %v1591, -1.0
        %v1593 = vadd.f32 %v1592, 1.0
        %v1594 = vmul.f32 %v1551, %v1593
        %v1595 = vpack.c.bf16 %v1594, %v1594
        %v1596 = vld [vmem:[%s1021] sm:$0xf]
        %v1597 = vld [vmem:[%s1021 + $0x4] sm:$0xf]
        %v1598 = vld [vmem:[%s1021 + $0x8] sm:$0xf]
        %v1599 = vld [vmem:[%s1021 + $0xc] sm:$0xf]
        %v1600 = vld [vmem:[%s1021 + $0x10] sm:$0xf]
        %v1601 = vld [vmem:[%s1021 + $0x14] sm:$0xf]
        %v1602 = vld [vmem:[%s1021 + $0x18] sm:$0xf]
        %v1603 = vld [vmem:[%s1021 + $0x1c] sm:$0xf]
        %v1604 = vld [vmem:[%s837] sm:$0x1]
        %v1606 = vperm.slane %v1604, 0
        %v1616 = vunpack.c.l.b16 %v1596
        %v1617 = vunpack.c.l.b16 %v1597
        %v1618 = vunpack.c.l.b16 %v1598
        %v1619 = vunpack.c.l.b16 %v1599
        %v1620 = vunpack.c.l.b16 %v1600
        %v1621 = vunpack.c.l.b16 %v1601
        %v1622 = vunpack.c.l.b16 %v1602
        %v1623 = vunpack.c.l.b16 %v1603
        %v1624 = vpack.c.b16 %v1617, %v1616
        %v1625 = vpack.c.b16 %v1619, %v1618
        %v1626 = vpack.c.b16 %v1621, %v1620
        %v1627 = vpack.c.b16 %v1623, %v1622
        %vm1632 = vcmask 523264
        %v1634 = vsel %vm1632, %v1595, 0
        %1636 = vmatpush.bf16.msra.mxu0 0
        %1637 = vmatpush.bf16.msra.mxu0 0
        %1638 = vmatpush.bf16.msra.mxu0 0
        %1639 = vmatpush.bf16.msra.mxu0 0
        %1640 = vmatpush.bf16.msra.mxu0 %v1627
        %1641 = vmatpush.bf16.msra.mxu0 %v1626
        %1642 = vmatpush.bf16.msra.mxu0 %v1625
        %1643 = vmatpush.bf16.msra.mxu0 %v1624
        %1644 = vmatmul.bf16.gmra.mxu0 %v1634
        %v1645 = vpop.f32.mrf.mxu0
        %v1646 = vadd.f32 %v1606, %v1645
        %v1647 = vpop.f32.mrf.mxu0
        %1648 = vdwg.mxu0
        %v1649 = vadd.f32 %v1646, %v1513
        %v1650 = vld [vmem:[%s846] sm:$0x1]
        %v1651 = vld [vmem:[%s855] sm:$0x1]
        %v1652 = vsel %vm1153, %v1649, 0.0
        %1653 = vadd.xlane.f32.xlu0 %v1652
        %v1654 = vpop.xlane.xlu0 %1653
        %v1655 = vmul.f32 %v1654, %v1486
        %v1656 = vsub.f32 %v1649, %v1655
        %v1657 = vmul.f32 %v1656, %v1656
        %v1658 = vsel %vm1153, %v1657, 0.0
        %1659 = vadd.xlane.f32.xlu0 %v1658
        %v1660 = vpop.xlane.xlu0 %1659
        %v1661 = vmul.f32 %v1660, %v1486
        %v1662 = vadd.f32 %v1661, 1e-12
        %v1663 = vrsqrt.pop %v1662
        %v1664 = vmul.f32 %v1663, %v1662
        %v1665 = vmul.f32 %v1664, %v1663
        %v1666 = vmul.f32 0.5, %v1665
        %v1667 = vsub.f32 1.5, %v1666
        %v1668 = vmul.f32 %v1663, %v1667
        %vm1669 = vweird.f32 %v1662
        %vm1670 = vweird.f32 %v1663
        %vm1671 = vmor %vm1669, %vm1670
        %v1672 = vsel %vm1671, %v1663, %v1668
        %v1673 = vmul.f32 %v1656, %v1672
        %v1675 = vperm.slane %v1650, 0
        %v1677 = vmul.f32 %v1673, %v1675
        %v1679 = vperm.slane %v1651, 0
        %v1681 = vadd.f32 %v1677, %v1679
        %1682 = vst.msk [vmem:[%s973] sm:$0xff] %vm1153, %v1681
        %p1683 = scmp.eq.s32.totalorder %s48, 1
        // Predicated region
        $region137: #{bert_contrastive_forward.1} parent=103 // pred_check
          %p1684 = pneg %p1683
        $region138: #{bert_contrastive_forward.1} parent=103 // pred_check_branch
          %1686 = sbr.rel (%p1684) target = $region140
        $region139: #{bert_contrastive_forward.1} parent=103 // pred_region
          %v1687 = vpack.c.bf16 %v1681, %v1681
          %v1688 = vld [vmem:[#allocation10] sm:$0xf]
          %v1689 = vld [vmem:[#allocation10 + $0x4] sm:$0xf]
          %v1690 = vld [vmem:[#allocation10 + $0x8] sm:$0xf]
          %v1691 = vld [vmem:[#allocation10 + $0xc] sm:$0xf]
          %v1692 = vld [vmem:[#allocation11] sm:$0x1]
          %v1697 = vunpack.c.l.b16 %v1688
          %v1698 = vunpack.c.l.b16 %v1689
          %v1699 = vunpack.c.l.b16 %v1690
          %v1700 = vunpack.c.l.b16 %v1691
          %v1701 = vpack.c.b16 %v1698, %v1697
          %v1702 = vpack.c.b16 %v1700, %v1699
          %v1706 = vsel %vm1153, %v1687, 0
          %1708 = vmatpush.bf16.msra.mxu0 0
          %1709 = vmatpush.bf16.msra.mxu0 0
          %1710 = vmatpush.bf16.msra.mxu0 0
          %1711 = vmatpush.bf16.msra.mxu0 0
          %1712 = vmatpush.bf16.msra.mxu0 0
          %1713 = vmatpush.bf16.msra.mxu0 0
          %1714 = vmatpush.bf16.msra.mxu0 %v1702
          %1715 = vmatpush.bf16.msra.mxu0 %v1701
          %1716 = vmatmul.bf16.gmra.mxu0 %v1706
          %v1717 = vpop.f32.mrf.mxu0
          %v1718 = vadd.f32 %v1692, %v1717
          %v1719 = vpop.f32.mrf.mxu0
          %1720 = vdwg.mxu0
          %v1721 = vtanh.pop %v1718
          %vm1722 = vcmask 253952
          %1723 = vst.msk [vmem:[%s979] sm:$0x1] %vm1722, %v1721
        $region140: #{bert_contrastive_forward.1} parent=103 // pred_fallthru
          _
        %s1724 = sand.u32 %s574, 1
        %s1725 = scalar_lea.sflag [#allocation4], %s1724
        %s1726 = sand.u32 %s574, 1
        %s1727 = smul.addr %s1726, 8
        %s1728 = scalar_lea.vmem [#allocation13], %s1727
        %s1729 = sand.u32 %s600, 1
        %s1730 = scalar_lea.sflag [#allocation15], %s1729
        %s1731 = sand.u32 %s600, 1
        %s1732 = scalar_lea.vmem [#allocation14], %s1731
        // Predicated region
        $region141: #{bert_contrastive_forward.1} parent=103 // pred_check
          %p1733 = pneg %p584
        $region142: #{bert_contrastive_forward.1} parent=103 // pred_check_branch
          %1735 = sbr.rel (%p1733) target = $region144
        $region143: #{bert_contrastive_forward.1} parent=103 // pred_region
          %1737 = vsyncadd %s1725, 0
          %s1738 = smul.addr %s47, 8
          %s1739 = scalar_lea.hbm %s21, %s1738
          %s1741 = sshll.u32 %s1728, 4
          %s1742 = int_to_ptr.vmem [resolvable:$true] %s1741
          %s1743 = sshll.u32 %s1739, 4
          %s1744 = int_to_ptr.hbm [resolvable:$true] %s1743
          %1746 = dma.vmem_to_hbm [thread:$0]  %s1742, 128, %s1744, %s1725
        $region144: #{bert_contrastive_forward.1} parent=103 // pred_fallthru
          _
        // Predicated region
        $region145: #{bert_contrastive_forward.1} parent=103 // pred_check
          %p1747 = pneg %p610
        $region146: #{bert_contrastive_forward.1} parent=103 // pred_check_branch
          %1749 = sbr.rel (%p1747) target = $region148
        $region147: #{bert_contrastive_forward.1} parent=103 // pred_region
          %1751 = vsyncadd %s1730, 0
          %s1752 = scalar_lea.hbm %s22, %s47
          %s1754 = sshll.u32 %s1732, 4
          %s1755 = int_to_ptr.vmem [resolvable:$true] %s1754
          %s1756 = sshll.u32 %s1752, 4
          %s1757 = int_to_ptr.hbm [resolvable:$true] %s1756
          %1759 = dma.vmem_to_hbm [thread:$0]  %s1755, 16, %s1757, %s1730
        $region148: #{bert_contrastive_forward.1} parent=103 // pred_fallthru
          _
      $region104: #{bert_contrastive_forward.1} parent=5 // pred_fallthru
        _
      %p1760 = scmp.le.s32.totalorder 2, %s38
      // Predicated region
      $region149: #{bert_contrastive_forward.1} parent=5 // pred_check
        %p1761 = pneg %p1760
      $region150: #{bert_contrastive_forward.1} parent=5 // pred_check_branch
        %1763 = sbr.rel (%p1761) target = $region152
      $region151: #{bert_contrastive_forward.1} parent=5 // pred_region
        %s1764 = ssub.s32 %s38, 2
        // Predicated region
        $region153: #{bert_contrastive_forward.1} parent=151 // pred_check
          %p1765 = pneg %p590
        $region154: #{bert_contrastive_forward.1} parent=151 // pred_check_branch
          %1767 = sbr.rel (%p1765) target = $region156
        $region155: #{bert_contrastive_forward.1} parent=151 // pred_region
          %s1768 = sand.u32 %s575, 1
          %s1769 = scalar_lea.sflag [#allocation4], %s1768
          %s1770 = sand.u32 %s575, 1
          %s1771 = smul.addr %s1770, 8
          %s1772 = scalar_lea.vmem [#allocation13], %s1771
          %1774 = dma.done %s1769, 128
        $region156: #{bert_contrastive_forward.1} parent=151 // pred_fallthru
          _
        // Predicated region
        $region157: #{bert_contrastive_forward.1} parent=151 // pred_check
          %p1775 = pneg %p616
        $region158: #{bert_contrastive_forward.1} parent=151 // pred_check_branch
          %1777 = sbr.rel (%p1775) target = $region160
        $region159: #{bert_contrastive_forward.1} parent=151 // pred_region
          %s1778 = sand.u32 %s601, 1
          %s1779 = scalar_lea.sflag [#allocation15], %s1778
          %s1780 = sand.u32 %s601, 1
          %s1781 = scalar_lea.vmem [#allocation14], %s1780
          %1783 = dma.done %s1779, 16
        $region160: #{bert_contrastive_forward.1} parent=151 // pred_fallthru
          _
      $region152: #{bert_contrastive_forward.1} parent=5 // pred_fallthru
        _
    $region6: #{bert_contrastive_forward.1} parent=1 // loop_footer
      %s42 = sadd.s32 1, %s38
    $region7: #{bert_contrastive_forward.1} parent=1 // loop_footer_branch
      %37 = sbr.rel target = $region3
    $region8: #{bert_contrastive_forward.1} parent=1 // loop_exit
      _
    %1784 = vsyncpa [#allocation3], 1
    %s1785 = scalar_lea.sflag [#allocation3], 1
    %1786 = vsyncpa %s1785, 1
    %1787 = vsyncpa [#allocation6], 1
    %1788 = vsyncpa [#allocation12], 1
    %1789 = vsyncpa [#allocation4], 1
    %s1790 = scalar_lea.sflag [#allocation4], 1
    %1791 = vsyncpa %s1790, 1
    %1792 = vsyncpa [#allocation15], 1
    %s1793 = scalar_lea.sflag [#allocation15], 1
    %1794 = vsyncpa %s1793, 1

</llo_original>
